<compile_context>
chip_gen: v7x
topology: tpu7x:2x2x1
jax: 0.10.0
libtpu: 0.0.40
codegen_flags: <defaults>
</compile_context>

<pallas_src>
import functools

import jax
import jax.numpy as jnp
from jax.experimental import pallas as pl
from jax.experimental.pallas import tpu as pltpu


def _linear_attention_kernel(x_ref, wqkv_ref, wout_ref, pgb_ref, agg_ref, dmask_ref,
                             o_ref, *, heads, dim_head):
    # x_ref:     (1, C, L)       input slab for this batch element
    # wqkv_ref:  (3*H*D, C)      fused qkv projection weight        (constant)
    # wout_ref:  (C, H*D)        output 1x1-conv weight             (constant)
    # pgb_ref:   (C, 3)          packed [bias, gamma, beta]         (constant)
    # agg_ref:   (H, H*D)        A[h, i] = 1 if i // D == h         (constant)
    # dmask_ref: (H*D, H*D)      Dm[i, j] = 1 if i % D == j % D     (constant)
    # o_ref:     (1, C, L)       output slab
    H, D = heads, dim_head
    HD = H * D
    x = x_ref[0]                                    # (C, L)
    L = x.shape[1]
    scale = float(D) ** -0.5

    # ---- fused qkv projection (one MXU matmul for all 3*H*D channels) ----
    qkv2 = jnp.dot(wqkv_ref[...], x, preferred_element_type=jnp.float32)   # (3HD, L)
    qkv3 = qkv2.reshape(3 * H, D, L)                # leading-dim split: layout-free
    q3 = qkv3[0:H]                                  # (H, D, L)
    k3 = qkv3[H:2 * H]
    v3 = qkv3[2 * H:3 * H]

    # ---- q: softmax over the head axis (dim=-2 of the (B, H, D*L) view) ----
    qm = jnp.max(q3, axis=0, keepdims=True)         # (1, D, L)
    qe = jnp.exp(q3 - qm)
    q3 = qe / jnp.sum(qe, axis=0, keepdims=True) * scale

    # ---- k: softmax over (d, l) jointly, per head (dim=-1 of (B, H, D*L)) ----
    km = jnp.max(jnp.max(k3, axis=2, keepdims=True), axis=1, keepdims=True)   # (H,1,1)
    ke = jnp.exp(k3 - km)
    ks = jnp.sum(jnp.sum(ke, axis=2, keepdims=True), axis=1, keepdims=True)   # (H,1,1)
    k3 = ke / ks

    # back to 2-D (HD, L) layout (leading-dim collapse: layout-free)
    q2 = q3.reshape(HD, L)
    k2 = k3.reshape(HD, L)
    v2 = v3.reshape(HD, L)

    A = agg_ref[...]                                # (H, HD)
    Dm = dmask_ref[...]                             # (HD, HD)

    # ---- context[hk, hv] = sum_{d,l} k[(hk,d), l] * v[(hv,d), l] ----
    z = jax.lax.dot_general(k2, v2, (((1,), (1,)), ((), ())),
                            preferred_element_type=jnp.float32)              # (HD, HD)
    z = z * Dm                                                                # keep d == d'
    t = jax.lax.dot_general(z, A, (((1,), (1,)), ((), ())),
                            preferred_element_type=jnp.float32)              # (HD, H)
    context = jnp.dot(A, t, preferred_element_type=jnp.float32)              # (H, H)

    # ---- out[(ho,d), l] = sum_hk context[hk, ho] * q[(hk,d), l] ----
    # e_mat[i, j] = context[head(j), head(i)] * (i % D == j % D)
    m1 = jax.lax.dot_general(context, A, (((0,), (0,)), ((), ())),
                             preferred_element_type=jnp.float32)             # (H, HD)
    e_mat = jax.lax.dot_general(A, m1, (((0,), (0,)), ((), ())),
                                preferred_element_type=jnp.float32) * Dm     # (HD, HD)
    out2 = jnp.dot(e_mat, q2, preferred_element_type=jnp.float32)            # (HD, L)

    # ---- to_out: 1x1 conv (+bias), then GroupNorm(1, C) over all (C, L) ----
    bias = pgb_ref[:, 0:1]                          # (C, 1)
    gamma = pgb_ref[:, 1:2]
    beta = pgb_ref[:, 2:3]
    y = jnp.dot(wout_ref[...], out2, preferred_element_type=jnp.float32) + bias   # (C, L)

    mu = jnp.mean(jnp.mean(y, axis=1, keepdims=True), axis=0, keepdims=True)      # (1, 1)
    d = y - mu
    var = jnp.mean(jnp.mean(d * d, axis=1, keepdims=True), axis=0, keepdims=True)
    y = d * jax.lax.rsqrt(var + 1e-5)
    y = y * gamma + beta
    o_ref[0] = y.astype(o_ref.dtype)


def linear_attention_forward(x, w_qkv, w_out, b_out, gamma, beta, *, heads=4, dim_head=32):
    """x: (B, C, L) f32. w_qkv: (3*H*D, C, 1). w_out: (C, H*D, 1). b/gamma/beta: (C,)."""
    B, C, L = x.shape
    HD = heads * dim_head
    assert w_qkv.shape[0] == 3 * HD and w_out.shape[1] == HD

    wqkv2 = w_qkv.reshape(3 * HD, C).astype(jnp.float32)
    wout2 = w_out.reshape(C, HD).astype(jnp.float32)
    pgb = jnp.stack([b_out, gamma, beta], axis=1).astype(jnp.float32)        # (C, 3)

    # batch-invariant constants (hoisted out of the kernel)
    hd_idx = jnp.arange(HD)
    agg = (hd_idx[None, :] // dim_head == jnp.arange(heads)[:, None]).astype(jnp.float32)   # (H, HD)
    dmask = (hd_idx[:, None] % dim_head == hd_idx[None, :] % dim_head).astype(jnp.float32)  # (HD, HD)

    kernel = functools.partial(_linear_attention_kernel, heads=heads, dim_head=dim_head)
    return pl.pallas_call(
        kernel,
        out_shape=jax.ShapeDtypeStruct((B, C, L), jnp.float32),
        grid_spec=pltpu.PrefetchScalarGridSpec(
            num_scalar_prefetch=0,
            grid=(B,),
            in_specs=[
                pl.BlockSpec((1, C, L), lambda b: (b, 0, 0)),        # x   (per batch)
                pl.BlockSpec((3 * HD, C), lambda b: (0, 0)),         # W_qkv  (constant)
                pl.BlockSpec((C, HD), lambda b: (0, 0)),             # W_out  (constant)
                pl.BlockSpec((C, 3), lambda b: (0, 0)),              # bias/gamma/beta
                pl.BlockSpec((heads, HD), lambda b: (0, 0)),         # head aggregation A
                pl.BlockSpec((HD, HD), lambda b: (0, 0)),            # same-d mask
            ],
            out_specs=pl.BlockSpec((1, C, L), lambda b: (b, 0, 0)),
        ),
        compiler_params=pltpu.CompilerParams(
            dimension_semantics=("parallel",)),
    )(x.astype(jnp.float32), wqkv2, wout2, pgb, agg, dmask)


def linear_attention_reference(x, w_qkv, w_out, b_out, gamma, beta, *, heads=4, dim_head=32):
    """Pure-JAX reference mirroring the PyTorch forward exactly."""
    B, C, L = x.shape
    HD = heads * dim_head
    wq = w_qkv.reshape(3 * HD, C)
    wo = w_out.reshape(C, HD)

    qkv = jnp.einsum('oc,bcl->bol', wq, x)                                   # (B, 3HD, L)
    q, k, v = jnp.split(qkv, 3, axis=1)

    def rearr(t):  # 'b (h c) x -> b h (c x)'
        return t.reshape(B, heads, dim_head, L).reshape(B, heads, dim_head * L)

    q, k, v = rearr(q), rearr(k), rearr(v)
    q = jax.nn.softmax(q, axis=-2)
    k = jax.nn.softmax(k, axis=-1)
    q = q * (dim_head ** -0.5)
    context = jnp.einsum('bdn,bhn->bdh', k, v)                               # (B, H, H)
    out = jnp.einsum('bdn,bde->bne', context, q)                             # (B, H, D*L)
    out = out.reshape(B, heads, dim_head, L).reshape(B, HD, L)               # 'b h (x y) -> b (h x) y'
    y = jnp.einsum('oc,bcl->bol', wo, out) + b_out[None, :, None]            # Conv1d(hidden, dim, 1)
    mu = y.mean(axis=(1, 2), keepdims=True)                                  # GroupNorm(1, dim)
    var = y.var(axis=(1, 2), keepdims=True)
    y = (y - mu) * jax.lax.rsqrt(var + 1e-5)
    return y * gamma[None, :, None] + beta[None, :, None]


if __name__ == "__main__":
    B, DIM, HEADS, DIM_HEAD, L = 2, 32, 4, 32, 128
    HIDDEN = HEADS * DIM_HEAD

    key = jax.random.PRNGKey(0)
    kx, kq, ko, kb, kg, kbe = jax.random.split(key, 6)

    x = jax.random.normal(kx, (B, DIM, L), dtype=jnp.float32)
    w_qkv = 0.1 * jax.random.normal(kq, (3 * HIDDEN, DIM, 1), dtype=jnp.float32)
    w_out = 0.1 * jax.random.normal(ko, (DIM, HIDDEN, 1), dtype=jnp.float32)
    b_out = 0.1 * jax.random.normal(kb, (DIM,), dtype=jnp.float32)
    gamma = 1.0 + 0.1 * jax.random.normal(kg, (DIM,), dtype=jnp.float32)
    beta = 0.1 * jax.random.normal(kbe, (DIM,), dtype=jnp.float32)

    out = linear_attention_forward(x, w_qkv, w_out, b_out, gamma, beta,
                                   heads=HEADS, dim_head=DIM_HEAD)
    out = jax.block_until_ready(out)

    ref = linear_attention_reference(x, w_qkv, w_out, b_out, gamma, beta,
                                     heads=HEADS, dim_head=DIM_HEAD)
    err = float(jnp.max(jnp.abs(out - ref)))
    assert jnp.allclose(out, ref, atol=2e-3, rtol=2e-3), f"max abs err = {err}"

    print("KERNEL_OK")
</pallas_src>

<mosaic_0001>
module attributes {stable_mosaic.version = 11 : i64} {
  func.func @_linear_attention_kernel(%arg0: i32, %arg1: memref<1x32x128xf32, #tpu.memory_space<vmem>>, %arg2: memref<384x32xf32, #tpu.memory_space<vmem>>, %arg3: memref<32x128xf32, #tpu.memory_space<vmem>>, %arg4: memref<32x3xf32, #tpu.memory_space<vmem>>, %arg5: memref<4x128xf32, #tpu.memory_space<vmem>>, %arg6: memref<128x128xf32, #tpu.memory_space<vmem>>, %arg7: memref<1x32x128xf32, #tpu.memory_space<vmem>>) attributes {dimension_semantics = [#tpu.dimension_semantics<parallel>], iteration_bounds = array<i64: 2>, scalar_prefetch = 0 : i64, scratch_operands = 0 : i64, tpu.core_type = #tpu.core_type<tc>, window_params = [{transform_indices = @transform_0, window_bounds = array<i64: 1, 32, 128>}, {pipeline_mode = #tpu.pipeline_mode<synchronous>, transform_indices = @transform_1, window_bounds = array<i64: 384, 32>}, {pipeline_mode = #tpu.pipeline_mode<synchronous>, transform_indices = @transform_2, window_bounds = array<i64: 32, 128>}, {pipeline_mode = #tpu.pipeline_mode<synchronous>, transform_indices = @transform_3, window_bounds = array<i64: 32, 3>}, {pipeline_mode = #tpu.pipeline_mode<synchronous>, transform_indices = @transform_4, window_bounds = array<i64: 4, 128>}, {pipeline_mode = #tpu.pipeline_mode<synchronous>, transform_indices = @transform_5, window_bounds = array<i64: 128, 128>}, {transform_indices = @transform_6, window_bounds = array<i64: 1, 32, 128>}]} {
    %c0 = arith.constant 0 : index
    %c0_0 = arith.constant 0 : index
    %c0_1 = arith.constant 0 : index
    %0 = vector.load %arg1[%c0, %c0_0, %c0_1] : memref<1x32x128xf32, #tpu.memory_space<vmem>>, vector<1x32x128xf32>
    %1 = vector.shape_cast %0 : vector<1x32x128xf32> to vector<32x128xf32>
    %c0_2 = arith.constant 0 : index
    %c0_3 = arith.constant 0 : index
    %2 = vector.load %arg2[%c0_2, %c0_3] : memref<384x32xf32, #tpu.memory_space<vmem>>, vector<384x32xf32>
    %cst = arith.constant dense<0.000000e+00> : vector<384x128xf32>
    %3 = tpu.matmul %2, %1, %cst {dimension_numbers = #tpu.dot_dimension_numbers<[1], [0], [0], [1], [0, 0, 1, 1], [], []>} : vector<384x32xf32>, vector<32x128xf32>, vector<384x128xf32> -> vector<384x128xf32>
    %4 = vector.shape_cast %3 : vector<384x128xf32> to vector<12x32x128xf32>
    %5 = vector.extract_strided_slice %4 {offsets = [0, 0, 0], sizes = [4, 32, 128], strides = [1, 1, 1]} : vector<12x32x128xf32> to vector<4x32x128xf32>
    %6 = vector.extract_strided_slice %4 {offsets = [4, 0, 0], sizes = [4, 32, 128], strides = [1, 1, 1]} : vector<12x32x128xf32> to vector<4x32x128xf32>
    %7 = vector.extract_strided_slice %4 {offsets = [8, 0, 0], sizes = [4, 32, 128], strides = [1, 1, 1]} : vector<12x32x128xf32> to vector<4x32x128xf32>
    %cst_4 = arith.constant dense<0xFF800000> : vector<32x128xf32>
    %8 = vector.multi_reduction <maximumf>, %5, %cst_4 [0] : vector<4x32x128xf32> to vector<32x128xf32>
    %9 = vector.shape_cast %8 : vector<32x128xf32> to vector<1x32x128xf32>
    %10 = vector.broadcast %9 : vector<1x32x128xf32> to vector<4x32x128xf32>
    %11 = arith.subf %5, %10 : vector<4x32x128xf32>
    %12 = math.exp %11 : vector<4x32x128xf32>
    %cst_5 = arith.constant dense<0.000000e+00> : vector<32x128xf32>
    %13 = vector.multi_reduction <add>, %12, %cst_5 [0] : vector<4x32x128xf32> to vector<32x128xf32>
    %14 = vector.shape_cast %13 : vector<32x128xf32> to vector<1x32x128xf32>
    %15 = vector.broadcast %14 : vector<1x32x128xf32> to vector<4x32x128xf32>
    %16 = arith.divf %12, %15 : vector<4x32x128xf32>
    %cst_6 = arith.constant 0.176776692 : f32
    %17 = vector.broadcast %cst_6 : f32 to vector<4x32x128xf32>
    %18 = arith.mulf %16, %17 : vector<4x32x128xf32>
    %cst_7 = arith.constant dense<0xFF800000> : vector<4x32xf32>
    %19 = vector.multi_reduction <maximumf>, %6, %cst_7 [2] : vector<4x32x128xf32> to vector<4x32xf32>
    %20 = vector.shape_cast %19 : vector<4x32xf32> to vector<4x32x1xf32>
    %cst_8 = arith.constant dense<0xFF800000> : vector<4x1xf32>
    %21 = vector.multi_reduction <maximumf>, %20, %cst_8 [1] : vector<4x32x1xf32> to vector<4x1xf32>
    %22 = vector.shape_cast %21 : vector<4x1xf32> to vector<4x1x1xf32>
    %23 = vector.broadcast %22 : vector<4x1x1xf32> to vector<4x32x128xf32>
    %24 = arith.subf %6, %23 : vector<4x32x128xf32>
    %25 = math.exp %24 : vector<4x32x128xf32>
    %cst_9 = arith.constant dense<0.000000e+00> : vector<4x32xf32>
    %26 = vector.multi_reduction <add>, %25, %cst_9 [2] : vector<4x32x128xf32> to vector<4x32xf32>
    %27 = vector.shape_cast %26 : vector<4x32xf32> to vector<4x32x1xf32>
    %cst_10 = arith.constant dense<0.000000e+00> : vector<4x1xf32>
    %28 = vector.multi_reduction <add>, %27, %cst_10 [1] : vector<4x32x1xf32> to vector<4x1xf32>
    %29 = vector.shape_cast %28 : vector<4x1xf32> to vector<4x1x1xf32>
    %30 = vector.broadcast %29 : vector<4x1x1xf32> to vector<4x32x128xf32>
    %31 = arith.divf %25, %30 : vector<4x32x128xf32>
    %32 = vector.shape_cast %18 : vector<4x32x128xf32> to vector<128x128xf32>
    %33 = vector.shape_cast %31 : vector<4x32x128xf32> to vector<128x128xf32>
    %34 = vector.shape_cast %7 : vector<4x32x128xf32> to vector<128x128xf32>
    %c0_11 = arith.constant 0 : index
    %c0_12 = arith.constant 0 : index
    %35 = vector.load %arg5[%c0_11, %c0_12] : memref<4x128xf32, #tpu.memory_space<vmem>>, vector<4x128xf32>
    %c0_13 = arith.constant 0 : index
    %c0_14 = arith.constant 0 : index
    %36 = vector.load %arg6[%c0_13, %c0_14] : memref<128x128xf32, #tpu.memory_space<vmem>>, vector<128x128xf32>
    %cst_15 = arith.constant dense<0.000000e+00> : vector<128x128xf32>
    %37 = tpu.matmul %33, %34, %cst_15 {dimension_numbers = #tpu.dot_dimension_numbers<[1], [1], [0], [0], [0, 0, 1, 0], [], []>} : vector<128x128xf32>, vector<128x128xf32>, vector<128x128xf32> -> vector<128x128xf32>
    %38 = arith.mulf %37, %36 : vector<128x128xf32>
    %cst_16 = arith.constant dense<0.000000e+00> : vector<128x4xf32>
    %39 = tpu.matmul %38, %35, %cst_16 {dimension_numbers = #tpu.dot_dimension_numbers<[1], [1], [0], [0], [0, 0, 1, 0], [], []>} : vector<128x128xf32>, vector<4x128xf32>, vector<128x4xf32> -> vector<128x4xf32>
    %cst_17 = arith.constant dense<0.000000e+00> : vector<4x4xf32>
    %40 = tpu.matmul %35, %39, %cst_17 {dimension_numbers = #tpu.dot_dimension_numbers<[1], [0], [0], [1], [0, 0, 1, 1], [], []>} : vector<4x128xf32>, vector<128x4xf32>, vector<4x4xf32> -> vector<4x4xf32>
    %cst_18 = arith.constant dense<0.000000e+00> : vector<4x128xf32>
    %41 = tpu.matmul %40, %35, %cst_18 {dimension_numbers = #tpu.dot_dimension_numbers<[0], [0], [1], [1], [0, 1, 1, 1], [], []>} : vector<4x4xf32>, vector<4x128xf32>, vector<4x128xf32> -> vector<4x128xf32>
    %cst_19 = arith.constant dense<0.000000e+00> : vector<128x128xf32>
    %42 = tpu.matmul %35, %41, %cst_19 {dimension_numbers = #tpu.dot_dimension_numbers<[0], [0], [1], [1], [0, 1, 1, 1], [], []>} : vector<4x128xf32>, vector<4x128xf32>, vector<128x128xf32> -> vector<128x128xf32>
    %43 = arith.mulf %42, %36 : vector<128x128xf32>
    %cst_20 = arith.constant dense<0.000000e+00> : vector<128x128xf32>
    %44 = tpu.matmul %43, %32, %cst_20 {dimension_numbers = #tpu.dot_dimension_numbers<[1], [0], [0], [1], [0, 0, 1, 1], [], []>} : vector<128x128xf32>, vector<128x128xf32>, vector<128x128xf32> -> vector<128x128xf32>
    %c0_21 = arith.constant 0 : index
    %c0_22 = arith.constant 0 : index
    %45 = vector.load %arg4[%c0_21, %c0_22] : memref<32x3xf32, #tpu.memory_space<vmem>>, vector<32x1xf32>
    %c0_23 = arith.constant 0 : index
    %c1 = arith.constant 1 : index
    %46 = vector.load %arg4[%c0_23, %c1] : memref<32x3xf32, #tpu.memory_space<vmem>>, vector<32x1xf32>
    %c0_24 = arith.constant 0 : index
    %c2 = arith.constant 2 : index
    %47 = vector.load %arg4[%c0_24, %c2] : memref<32x3xf32, #tpu.memory_space<vmem>>, vector<32x1xf32>
    %c0_25 = arith.constant 0 : index
    %c0_26 = arith.constant 0 : index
    %48 = vector.load %arg3[%c0_25, %c0_26] : memref<32x128xf32, #tpu.memory_space<vmem>>, vector<32x128xf32>
    %cst_27 = arith.constant dense<0.000000e+00> : vector<32x128xf32>
    %49 = tpu.matmul %48, %44, %cst_27 {dimension_numbers = #tpu.dot_dimension_numbers<[1], [0], [0], [1], [0, 0, 1, 1], [], []>} : vector<32x128xf32>, vector<128x128xf32>, vector<32x128xf32> -> vector<32x128xf32>
    %50 = vector.broadcast %45 : vector<32x1xf32> to vector<32x128xf32>
    %51 = arith.addf %49, %50 : vector<32x128xf32>
    %cst_28 = arith.constant dense<0.000000e+00> : vector<32xf32>
    %52 = vector.multi_reduction <add>, %51, %cst_28 [1] : vector<32x128xf32> to vector<32xf32>
    %53 = vector.shape_cast %52 : vector<32xf32> to vector<32x1xf32>
    %cst_29 = arith.constant 1.280000e+02 : f32
    %54 = vector.broadcast %cst_29 : f32 to vector<32x1xf32>
    %55 = arith.divf %53, %54 : vector<32x1xf32>
    %cst_30 = arith.constant dense<0.000000e+00> : vector<1xf32>
    %56 = vector.multi_reduction <add>, %55, %cst_30 [0] : vector<32x1xf32> to vector<1xf32>
    %57 = vector.shape_cast %56 : vector<1xf32> to vector<1x1xf32>
    %cst_31 = arith.constant 3.200000e+01 : f32
    %58 = vector.broadcast %cst_31 : f32 to vector<1x1xf32>
    %59 = arith.divf %57, %58 : vector<1x1xf32>
    %60 = vector.broadcast %59 : vector<1x1xf32> to vector<32x128xf32>
    %61 = arith.subf %51, %60 : vector<32x128xf32>
    %62 = arith.mulf %61, %61 : vector<32x128xf32>
    %cst_32 = arith.constant dense<0.000000e+00> : vector<32xf32>
    %63 = vector.multi_reduction <add>, %62, %cst_32 [1] : vector<32x128xf32> to vector<32xf32>
    %64 = vector.shape_cast %63 : vector<32xf32> to vector<32x1xf32>
    %cst_33 = arith.constant 1.280000e+02 : f32
    %65 = vector.broadcast %cst_33 : f32 to vector<32x1xf32>
    %66 = arith.divf %64, %65 : vector<32x1xf32>
    %cst_34 = arith.constant dense<0.000000e+00> : vector<1xf32>
    %67 = vector.multi_reduction <add>, %66, %cst_34 [0] : vector<32x1xf32> to vector<1xf32>
    %68 = vector.shape_cast %67 : vector<1xf32> to vector<1x1xf32>
    %cst_35 = arith.constant 3.200000e+01 : f32
    %69 = vector.broadcast %cst_35 : f32 to vector<1x1xf32>
    %70 = arith.divf %68, %69 : vector<1x1xf32>
    %cst_36 = arith.constant 9.99999974E-6 : f32
    %71 = vector.broadcast %cst_36 : f32 to vector<1x1xf32>
    %72 = arith.addf %70, %71 : vector<1x1xf32>
    %73 = math.rsqrt %72 : vector<1x1xf32>
    %74 = vector.broadcast %73 : vector<1x1xf32> to vector<32x128xf32>
    %75 = arith.mulf %61, %74 : vector<32x128xf32>
    %76 = vector.broadcast %46 : vector<32x1xf32> to vector<32x128xf32>
    %77 = arith.mulf %75, %76 : vector<32x128xf32>
    %78 = vector.broadcast %47 : vector<32x1xf32> to vector<32x128xf32>
    %79 = arith.addf %77, %78 : vector<32x128xf32>
    %c0_37 = arith.constant 0 : index
    %c0_38 = arith.constant 0 : index
    %c0_39 = arith.constant 0 : index
    %80 = vector.load %arg7[%c0_37, %c0_38, %c0_39] : memref<1x32x128xf32, #tpu.memory_space<vmem>>, vector<1x32x128xf32>
    %81 = vector.shape_cast %80 : vector<1x32x128xf32> to vector<32x128xf32>
    %82 = vector.shape_cast %79 : vector<32x128xf32> to vector<1x32x128xf32>
    tpu.vector_store %arg7[%c0_37, %c0_38, %c0_39], %82 {strides = array<i32>} : memref<1x32x128xf32, #tpu.memory_space<vmem>>, vector<1x32x128xf32>,
    return
  }
  func.func @transform_0(%arg0: i32) -> (i32, i32, i32) {
    %c0_i32 = arith.constant 0 : i32
    %c0_i32_0 = arith.constant 0 : i32
    %c0_i32_1 = arith.constant 0 : i32
    return %arg0, %c0_i32, %c0_i32_0 : i32, i32, i32
  }
  func.func @transform_1(%arg0: i32) -> (i32, i32) {
    %c0_i32 = arith.constant 0 : i32
    %c0_i32_0 = arith.constant 0 : i32
    %c0_i32_1 = arith.constant 0 : i32
    return %c0_i32, %c0_i32_0 : i32, i32
  }
  func.func @transform_2(%arg0: i32) -> (i32, i32) {
    %c0_i32 = arith.constant 0 : i32
    %c0_i32_0 = arith.constant 0 : i32
    %c0_i32_1 = arith.constant 0 : i32
    return %c0_i32, %c0_i32_0 : i32, i32
  }
  func.func @transform_3(%arg0: i32) -> (i32, i32) {
    %c0_i32 = arith.constant 0 : i32
    %c0_i32_0 = arith.constant 0 : i32
    %c0_i32_1 = arith.constant 0 : i32
    return %c0_i32, %c0_i32_0 : i32, i32
  }
  func.func @transform_4(%arg0: i32) -> (i32, i32) {
    %c0_i32 = arith.constant 0 : i32
    %c0_i32_0 = arith.constant 0 : i32
    %c0_i32_1 = arith.constant 0 : i32
    return %c0_i32, %c0_i32_0 : i32, i32
  }
  func.func @transform_5(%arg0: i32) -> (i32, i32) {
    %c0_i32 = arith.constant 0 : i32
    %c0_i32_0 = arith.constant 0 : i32
    %c0_i32_1 = arith.constant 0 : i32
    return %c0_i32, %c0_i32_0 : i32, i32
  }
  func.func @transform_6(%arg0: i32) -> (i32, i32, i32) {
    %c0_i32 = arith.constant 0 : i32
    %c0_i32_0 = arith.constant 0 : i32
    %c0_i32_1 = arith.constant 0 : i32
    return %arg0, %c0_i32, %c0_i32_0 : i32, i32, i32
  }
}

</mosaic_0001>

<llo_original>
// kernel: tpu_custom_call.1
$region0: #{tpu_custom_call.1}
  #allocation0 [shape = 'u32[]', space=smem, size = 0x4, offset = 0x4, fixed_abs, tag = 'smem constant byte address 0x4 - core index']
  #allocation1 [shape = 'u32[144,128]{1,0:T(1,128)}', space=vmem, size = 0x12000, scoped, tag = 'internal scratch']
  %s0 = inlined_call_operand.vmem [shape: f32[2,32,128], index: 0, kind: input, shape index: {}]
  %s1 = inlined_call_operand.vmem [shape: f32[384,32], index: 1, kind: input, shape index: {}]
  %s2 = inlined_call_operand.vmem [shape: f32[32,128], index: 2, kind: input, shape index: {}]
  %s3 = inlined_call_operand.vmem [shape: f32[32,3], index: 3, kind: input, shape index: {}]
  %s4 = inlined_call_operand.vmem [shape: f32[4,128], index: 4, kind: input, shape index: {}]
  %s5 = inlined_call_operand.vmem [shape: f32[128,128], index: 5, kind: input, shape index: {}]
  %s6 = inlined_call_operand.hbm [shape: f32[2,32,128], index: 6, kind: output, shape index: {}]
  %s7 = sld [smem:[#allocation0]]
  $region57: #{tpu_custom_call.1} parent=0
    _
  %s9 = ssub.s32 1, %s7
  %s10 = scalar_select 0, %s9, %s7
  $region1: #{tpu_custom_call.1} parent=0
    #allocation2 [shape = 'u8[32768]{0}', space=vmem, size = 0x8000, scoped, tag = 'output window, operand 0']
    #allocation3 [shape = 's32[2]{0}', space=sflag, size = 0x8, scoped, tag = 'scoped memory for tpu_custom_call.1']
    %11 = vsyncpa [#allocation3], 0
    %s12 = scalar_lea.sflag [#allocation3], 1
    %13 = vsyncpa %s12, 0
    loop: start=0, step=1, limit=4
    $region2: #{tpu_custom_call.1} parent=1 // loop_pre_header
      _
    $region3: #{tpu_custom_call.1} parent=1 // loop_header
      %s15 = sphi 0, %s19
      %p16 = scmp.ge.s32.totalorder %s15, 4
      %s25 = sphi 0, %s27
      %s28 = sphi 0, %s25
      %s29 = sphi 0, %s28
      %s45 = sphi 0, %s29
      %s49 = sphi 0, %s49
      %s51 = sphi 0, %s49
      %s52 = sphi 0, %s51
      %s66 = sphi 0, %s52
      %s70 = sphi 0, %s70
      %s72 = sphi 0, %s70
      %s73 = sphi 0, %s72
      %s87 = sphi 0, %s73
      %s91 = sphi 0, %s91
      %s93 = sphi 0, %s91
      %s94 = sphi 0, %s93
      %s108 = sphi 0, %s94
      %s112 = sphi 0, %s112
      %s114 = sphi 0, %s112
      %s115 = sphi 0, %s114
      %s129 = sphi 0, %s115
      %s133 = sphi 0, %s133
      %s135 = sphi 0, %s133
      %s136 = sphi 0, %s135
      %s150 = sphi 0, %s136
      %s156 = sphi 0, %s158
      %s159 = sphi 0, %s156
      %s160 = sphi 0, %s159
      %s176 = sphi 0, %s160
    $region4: #{tpu_custom_call.1} parent=1 // loop_header_branch
      %18 = sbr.rel (%p16) target = $region8
    $region5: #{tpu_custom_call.1} parent=1 // loop_body
      %s20 = ssub.s32 %s15, 1
      %s21 = ssub.s32 %s15, 2
      %s22 = sadd.s32 %s15, 1
      %s23 = ssub.s32 %s15, %s22
      %p24 = scmp.eq.s32.totalorder %s23, 0
      %s26 = sadd.s32 %s25, 1
      %s27 = scalar_select %p24, %s25, %s26
      %p30 = pneg %p24
      %p31 = scmp.eq.s32.totalorder %s15, 1
      %p32 = por %p30, %p31
      %p33 = scmp.ne.s32.totalorder %s25, %s28
      %p34 = scmp.eq.s32.totalorder %s15, 0
      %p35 = por %p33, %p34
      %p36 = scmp.ne.s32.totalorder %s25, %s28
      %p37 = scmp.eq.s32.totalorder %s20, 1
      %p38 = por %p36, %p37
      %p39 = scmp.ne.s32.totalorder %s28, %s29
      %p40 = scmp.eq.s32.totalorder %s20, 0
      %p41 = por %p39, %p40
      %p42 = scmp.ne.s32.totalorder %s28, %s29
      %p43 = scmp.eq.s32.totalorder %s21, 1
      %p44 = por %p42, %p43
      %p46 = scmp.ne.s32.totalorder %s29, %s45
      %p47 = scmp.eq.s32.totalorder %s21, 0
      %p48 = por %p46, %p47
      %s50 = sadd.s32 %s49, 1
      %p53 = scmp.eq.s32.totalorder %s15, 1
      %p54 = scmp.ne.s32.totalorder %s49, %s51
      %p55 = scmp.eq.s32.totalorder %s15, 0
      %p56 = por %p54, %p55
      %p57 = scmp.ne.s32.totalorder %s49, %s51
      %p58 = scmp.eq.s32.totalorder %s20, 1
      %p59 = por %p57, %p58
      %p60 = scmp.ne.s32.totalorder %s51, %s52
      %p61 = scmp.eq.s32.totalorder %s20, 0
      %p62 = por %p60, %p61
      %p63 = scmp.ne.s32.totalorder %s51, %s52
      %p64 = scmp.eq.s32.totalorder %s21, 1
      %p65 = por %p63, %p64
      %p67 = scmp.ne.s32.totalorder %s52, %s66
      %p68 = scmp.eq.s32.totalorder %s21, 0
      %p69 = por %p67, %p68
      %s71 = sadd.s32 %s70, 1
      %p74 = scmp.eq.s32.totalorder %s15, 1
      %p75 = scmp.ne.s32.totalorder %s70, %s72
      %p76 = scmp.eq.s32.totalorder %s15, 0
      %p77 = por %p75, %p76
      %p78 = scmp.ne.s32.totalorder %s70, %s72
      %p79 = scmp.eq.s32.totalorder %s20, 1
      %p80 = por %p78, %p79
      %p81 = scmp.ne.s32.totalorder %s72, %s73
      %p82 = scmp.eq.s32.totalorder %s20, 0
      %p83 = por %p81, %p82
      %p84 = scmp.ne.s32.totalorder %s72, %s73
      %p85 = scmp.eq.s32.totalorder %s21, 1
      %p86 = por %p84, %p85
      %p88 = scmp.ne.s32.totalorder %s73, %s87
      %p89 = scmp.eq.s32.totalorder %s21, 0
      %p90 = por %p88, %p89
      %s92 = sadd.s32 %s91, 1
      %p95 = scmp.eq.s32.totalorder %s15, 1
      %p96 = scmp.ne.s32.totalorder %s91, %s93
      %p97 = scmp.eq.s32.totalorder %s15, 0
      %p98 = por %p96, %p97
      %p99 = scmp.ne.s32.totalorder %s91, %s93
      %p100 = scmp.eq.s32.totalorder %s20, 1
      %p101 = por %p99, %p100
      %p102 = scmp.ne.s32.totalorder %s93, %s94
      %p103 = scmp.eq.s32.totalorder %s20, 0
      %p104 = por %p102, %p103
      %p105 = scmp.ne.s32.totalorder %s93, %s94
      %p106 = scmp.eq.s32.totalorder %s21, 1
      %p107 = por %p105, %p106
      %p109 = scmp.ne.s32.totalorder %s94, %s108
      %p110 = scmp.eq.s32.totalorder %s21, 0
      %p111 = por %p109, %p110
      %s113 = sadd.s32 %s112, 1
      %p116 = scmp.eq.s32.totalorder %s15, 1
      %p117 = scmp.ne.s32.totalorder %s112, %s114
      %p118 = scmp.eq.s32.totalorder %s15, 0
      %p119 = por %p117, %p118
      %p120 = scmp.ne.s32.totalorder %s112, %s114
      %p121 = scmp.eq.s32.totalorder %s20, 1
      %p122 = por %p120, %p121
      %p123 = scmp.ne.s32.totalorder %s114, %s115
      %p124 = scmp.eq.s32.totalorder %s20, 0
      %p125 = por %p123, %p124
      %p126 = scmp.ne.s32.totalorder %s114, %s115
      %p127 = scmp.eq.s32.totalorder %s21, 1
      %p128 = por %p126, %p127
      %p130 = scmp.ne.s32.totalorder %s115, %s129
      %p131 = scmp.eq.s32.totalorder %s21, 0
      %p132 = por %p130, %p131
      %s134 = sadd.s32 %s133, 1
      %p137 = scmp.eq.s32.totalorder %s15, 1
      %p138 = scmp.ne.s32.totalorder %s133, %s135
      %p139 = scmp.eq.s32.totalorder %s15, 0
      %p140 = por %p138, %p139
      %p141 = scmp.ne.s32.totalorder %s133, %s135
      %p142 = scmp.eq.s32.totalorder %s20, 1
      %p143 = por %p141, %p142
      %p144 = scmp.ne.s32.totalorder %s135, %s136
      %p145 = scmp.eq.s32.totalorder %s20, 0
      %p146 = por %p144, %p145
      %p147 = scmp.ne.s32.totalorder %s135, %s136
      %p148 = scmp.eq.s32.totalorder %s21, 1
      %p149 = por %p147, %p148
      %p151 = scmp.ne.s32.totalorder %s136, %s150
      %p152 = scmp.eq.s32.totalorder %s21, 0
      %p153 = por %p151, %p152
      %s154 = ssub.s32 %s15, %s22
      %p155 = scmp.eq.s32.totalorder %s154, 0
      %s157 = sadd.s32 %s156, 1
      %s158 = scalar_select %p155, %s156, %s157
      %p161 = pneg %p155
      %p162 = scmp.eq.s32.totalorder %s15, 1
      %p163 = por %p161, %p162
      %p164 = scmp.ne.s32.totalorder %s156, %s159
      %p165 = scmp.eq.s32.totalorder %s15, 0
      %p166 = por %p164, %p165
      %p167 = scmp.ne.s32.totalorder %s156, %s159
      %p168 = scmp.eq.s32.totalorder %s20, 1
      %p169 = por %p167, %p168
      %p170 = scmp.ne.s32.totalorder %s159, %s160
      %p171 = scmp.eq.s32.totalorder %s20, 0
      %p172 = por %p170, %p171
      %p173 = scmp.ne.s32.totalorder %s159, %s160
      %p174 = scmp.eq.s32.totalorder %s21, 1
      %p175 = por %p173, %p174
      %p177 = scmp.ne.s32.totalorder %s160, %s176
      %p178 = scmp.eq.s32.totalorder %s21, 0
      %p179 = por %p177, %p178
      %p180 = scmp.le.s32.totalorder 1, %s15
      %p181 = scmp.lt.s32.totalorder %s15, 3
      %p182 = pnand %p180, %p181
      %p183 = pneg %p182
      // Predicated region
      $region9: #{tpu_custom_call.1} parent=5 // pred_check
        _
      $region10: #{tpu_custom_call.1} parent=5 // pred_check_branch
        %185 = sbr.rel (%p182) target = $region12
      $region11: #{tpu_custom_call.1} parent=5 // pred_region
        %s186 = ssub.s32 %s15, 1
        // Predicated region
        $region13: #{tpu_custom_call.1} parent=11 // pred_check
          %p187 = pneg %p62
        $region14: #{tpu_custom_call.1} parent=11 // pred_check_branch
          %189 = sbr.rel (%p187) target = $region16
        $region15: #{tpu_custom_call.1} parent=11 // pred_region
          _
        $region16: #{tpu_custom_call.1} parent=11 // pred_fallthru
          _
        // Predicated region
        $region17: #{tpu_custom_call.1} parent=11 // pred_check
          %p190 = pneg %p83
        $region18: #{tpu_custom_call.1} parent=11 // pred_check_branch
          %192 = sbr.rel (%p190) target = $region20
        $region19: #{tpu_custom_call.1} parent=11 // pred_region
          _
        $region20: #{tpu_custom_call.1} parent=11 // pred_fallthru
          _
        // Predicated region
        $region21: #{tpu_custom_call.1} parent=11 // pred_check
          %p193 = pneg %p104
        $region22: #{tpu_custom_call.1} parent=11 // pred_check_branch
          %195 = sbr.rel (%p193) target = $region24
        $region23: #{tpu_custom_call.1} parent=11 // pred_region
          _
        $region24: #{tpu_custom_call.1} parent=11 // pred_fallthru
          _
        // Predicated region
        $region25: #{tpu_custom_call.1} parent=11 // pred_check
          %p196 = pneg %p125
        $region26: #{tpu_custom_call.1} parent=11 // pred_check_branch
          %198 = sbr.rel (%p196) target = $region28
        $region27: #{tpu_custom_call.1} parent=11 // pred_region
          _
        $region28: #{tpu_custom_call.1} parent=11 // pred_fallthru
          _
        // Predicated region
        $region29: #{tpu_custom_call.1} parent=11 // pred_check
          %p199 = pneg %p146
        $region30: #{tpu_custom_call.1} parent=11 // pred_check_branch
          %201 = sbr.rel (%p199) target = $region32
        $region31: #{tpu_custom_call.1} parent=11 // pred_region
          _
        $region32: #{tpu_custom_call.1} parent=11 // pred_fallthru
          _
      $region12: #{tpu_custom_call.1} parent=5 // pred_fallthru
        _
      %p202 = scmp.lt.s32.totalorder %s15, 2
      // Predicated region
      $region33: #{tpu_custom_call.1} parent=5 // pred_check
        %p203 = pneg %p202
      $region34: #{tpu_custom_call.1} parent=5 // pred_check_branch
        %205 = sbr.rel (%p203) target = $region36
      $region35: #{tpu_custom_call.1} parent=5 // pred_region
        // Predicated region
        $region37: #{tpu_custom_call.1} parent=35 // pred_check
          %p206 = pneg %p35
        $region38: #{tpu_custom_call.1} parent=35 // pred_check_branch
          %208 = sbr.rel (%p206) target = $region40
        $region39: #{tpu_custom_call.1} parent=35 // pred_region
          %p209 = scmp.lt.s32.totalorder %s15, 1
          %s210 = scalar_select %p209, %s15, 1
          %s211 = smul.addr %s210, 4
          %s212 = smul.addr %s211, 8
          %s213 = scalar_lea.vmem %s0, %s212
        $region40: #{tpu_custom_call.1} parent=35 // pred_fallthru
          _
      $region36: #{tpu_custom_call.1} parent=5 // pred_fallthru
        _
      %p214 = scmp.le.s32.totalorder 1, %s15
      %p215 = scmp.lt.s32.totalorder %s15, 3
      %p216 = pnand %p214, %p215
      %p217 = pneg %p216
      // Predicated region
      $region41: #{tpu_custom_call.1} parent=5 // pred_check
        _
      $region42: #{tpu_custom_call.1} parent=5 // pred_check_branch
        %219 = sbr.rel (%p216) target = $region44
      $region43: #{tpu_custom_call.1} parent=5 // pred_region
        %s220 = ssub.s32 %s15, 1
        %p221 = scmp.lt.s32.totalorder %s20, 1
        %s222 = scalar_select %p221, %s20, 1
        %s223 = smul.addr %s222, 4
        %s224 = smul.addr %s223, 8
        %s225 = scalar_lea.vmem %s0, %s224
        %p226 = pneg %p41
        %p227 = pneg %p38
        %p228 = pneg %p62
        %p229 = pneg %p59
        %p230 = pneg %p83
        %p231 = pneg %p80
        %p232 = pneg %p104
        %p233 = pneg %p101
        %p234 = pneg %p125
        %p235 = pneg %p122
        %p236 = pneg %p146
        %p237 = pneg %p143
        %p238 = pneg %p172
        %p239 = pneg %p169
        %s240 = sand.u32 %s159, 1
        %s241 = scalar_lea.sflag [#allocation3], %s240
        %s242 = sand.u32 %s159, 1
        %s243 = smul.addr %s242, 32
        %s244 = scalar_lea.vmem [#allocation2], %s243
        %p245 = scmp.lt.s32.totalorder %s20, 1
        %s246 = scalar_select %p245, %s20, 1
        %s247 = smul.addr %s246, 4
        %s248 = smul.addr %s247, 8
        %s249 = scalar_lea.vmem %s0, %s248
        %v250 = vld [vmem:[%s249] sm:$0xff]
        %v251 = vld [vmem:[%s249 + $0x8] sm:$0xff]
        %v252 = vld [vmem:[%s249 + $0x10] sm:$0xff]
        %v253 = vld [vmem:[%s249 + $0x18] sm:$0xff]
        %v254 = vld [vmem:[%s1] sm:$0xff]
        %v255 = vld [vmem:[%s1 + $0x8] sm:$0xff]
        %v256 = vld [vmem:[%s1 + $0x10] sm:$0xff]
        %v257 = vld [vmem:[%s1 + $0x18] sm:$0xff]
        %v258 = vld [vmem:[%s1 + $0x20] sm:$0xff]
        %v259 = vld [vmem:[%s1 + $0x28] sm:$0xff]
        %v260 = vld [vmem:[%s1 + $0x30] sm:$0xff]
        %v261 = vld [vmem:[%s1 + $0x38] sm:$0xff]
        %v262 = vld [vmem:[%s1 + $0x40] sm:$0xff]
        %v263 = vld [vmem:[%s1 + $0x48] sm:$0xff]
        %v264 = vld [vmem:[%s1 + $0x50] sm:$0xff]
        %v265 = vld [vmem:[%s1 + $0x58] sm:$0xff]
        %v266 = vld [vmem:[%s1 + $0x60] sm:$0xff]
        %v267 = vld [vmem:[%s1 + $0x68] sm:$0xff]
        %v268 = vld [vmem:[%s1 + $0x70] sm:$0xff]
        %v269 = vld [vmem:[%s1 + $0x78] sm:$0xff]
        %v270 = vld [vmem:[%s1 + $0x80] sm:$0xff]
        %v271 = vld [vmem:[%s1 + $0x88] sm:$0xff]
        %v272 = vld [vmem:[%s1 + $0x90] sm:$0xff]
        %v273 = vld [vmem:[%s1 + $0x98] sm:$0xff]
        %v274 = vld [vmem:[%s1 + $0xa0] sm:$0xff]
        %v275 = vld [vmem:[%s1 + $0xa8] sm:$0xff]
        %v276 = vld [vmem:[%s1 + $0xb0] sm:$0xff]
        %v277 = vld [vmem:[%s1 + $0xb8] sm:$0xff]
        %v278 = vld [vmem:[%s1 + $0xc0] sm:$0xff]
        %v279 = vld [vmem:[%s1 + $0xc8] sm:$0xff]
        %v280 = vld [vmem:[%s1 + $0xd0] sm:$0xff]
        %v281 = vld [vmem:[%s1 + $0xd8] sm:$0xff]
        %v282 = vld [vmem:[%s1 + $0xe0] sm:$0xff]
        %v283 = vld [vmem:[%s1 + $0xe8] sm:$0xff]
        %v284 = vld [vmem:[%s1 + $0xf0] sm:$0xff]
        %v285 = vld [vmem:[%s1 + $0xf8] sm:$0xff]
        %v286 = vld [vmem:[%s1 + $0x100] sm:$0xff]
        %v287 = vld [vmem:[%s1 + $0x108] sm:$0xff]
        %v288 = vld [vmem:[%s1 + $0x110] sm:$0xff]
        %v289 = vld [vmem:[%s1 + $0x118] sm:$0xff]
        %v290 = vld [vmem:[%s1 + $0x120] sm:$0xff]
        %v291 = vld [vmem:[%s1 + $0x128] sm:$0xff]
        %v292 = vld [vmem:[%s1 + $0x130] sm:$0xff]
        %v293 = vld [vmem:[%s1 + $0x138] sm:$0xff]
        %v294 = vld [vmem:[%s1 + $0x140] sm:$0xff]
        %v295 = vld [vmem:[%s1 + $0x148] sm:$0xff]
        %v296 = vld [vmem:[%s1 + $0x150] sm:$0xff]
        %v297 = vld [vmem:[%s1 + $0x158] sm:$0xff]
        %v298 = vld [vmem:[%s1 + $0x160] sm:$0xff]
        %v299 = vld [vmem:[%s1 + $0x168] sm:$0xff]
        %v300 = vld [vmem:[%s1 + $0x170] sm:$0xff]
        %v301 = vld [vmem:[%s1 + $0x178] sm:$0xff]
        %vm302 = vcmask 261120
        %v304 = vsel %vm302, %v254, 0
        %v307 = vsel %vm302, %v255, 0
        %v310 = vsel %vm302, %v256, 0
        %v313 = vsel %vm302, %v257, 0
        %v316 = vsel %vm302, %v258, 0
        %v319 = vsel %vm302, %v259, 0
        %v322 = vsel %vm302, %v260, 0
        %v325 = vsel %vm302, %v261, 0
        %v328 = vsel %vm302, %v262, 0
        %v331 = vsel %vm302, %v263, 0
        %v334 = vsel %vm302, %v264, 0
        %v337 = vsel %vm302, %v265, 0
        %v340 = vsel %vm302, %v266, 0
        %v343 = vsel %vm302, %v267, 0
        %v346 = vsel %vm302, %v268, 0
        %v349 = vsel %vm302, %v269, 0
        %v352 = vsel %vm302, %v270, 0
        %v355 = vsel %vm302, %v271, 0
        %v358 = vsel %vm302, %v272, 0
        %v361 = vsel %vm302, %v273, 0
        %v364 = vsel %vm302, %v274, 0
        %v367 = vsel %vm302, %v275, 0
        %v370 = vsel %vm302, %v276, 0
        %v373 = vsel %vm302, %v277, 0
        %v376 = vsel %vm302, %v278, 0
        %v379 = vsel %vm302, %v279, 0
        %v382 = vsel %vm302, %v280, 0
        %v385 = vsel %vm302, %v281, 0
        %v388 = vsel %vm302, %v282, 0
        %v391 = vsel %vm302, %v283, 0
        %v394 = vsel %vm302, %v284, 0
        %v397 = vsel %vm302, %v285, 0
        %v400 = vsel %vm302, %v286, 0
        %v403 = vsel %vm302, %v287, 0
        %v406 = vsel %vm302, %v288, 0
        %v409 = vsel %vm302, %v289, 0
        %v412 = vsel %vm302, %v290, 0
        %v415 = vsel %vm302, %v291, 0
        %v418 = vsel %vm302, %v292, 0
        %v421 = vsel %vm302, %v293, 0
        %v424 = vsel %vm302, %v294, 0
        %v427 = vsel %vm302, %v295, 0
        %v430 = vsel %vm302, %v296, 0
        %v433 = vsel %vm302, %v297, 0
        %v436 = vsel %vm302, %v298, 0
        %v439 = vsel %vm302, %v299, 0
        %v442 = vsel %vm302, %v300, 0
        %v445 = vsel %vm302, %v301, 0
        %447 = vmatprep.subr.mxu0 0.0
        %448 = vmatpush1.msra.mxu0 %v250
        %449 = vmatprep.subr.mxu0 0.0
        %450 = vmatpush1.msra.mxu0 %v251
        %451 = vmatprep.subr.mxu0 0.0
        %452 = vmatpush1.msra.mxu0 %v252
        %453 = vmatprep.subr.mxu0 0.0
        %454 = vmatpush1.msra.mxu0 %v253
        %455 = vmatprep.subr.mxu0 0.0
        %456 = vmatpush1.msra.mxu0 0.0
        %457 = vmatprep.subr.mxu0 0.0
        %458 = vmatpush1.msra.mxu0 0.0
        %459 = vmatprep.subr.mxu0 0.0
        %460 = vmatpush1.msra.mxu0 0.0
        %461 = vmatprep.subr.mxu0 0.0
        %462 = vmatpush1.msra.mxu0 0.0
        %463 = vmatprep.subr.mxu0 0.0
        %464 = vmatpush1.msra.mxu0 0.0
        %465 = vmatprep.subr.mxu0 0.0
        %466 = vmatpush1.msra.mxu0 0.0
        %467 = vmatprep.subr.mxu0 0.0
        %468 = vmatpush1.msra.mxu0 0.0
        %469 = vmatprep.subr.mxu0 0.0
        %470 = vmatpush1.msra.mxu0 0.0
        %471 = vmatprep.subr.mxu0 0.0
        %472 = vmatpush1.msra.mxu0 0.0
        %473 = vmatprep.subr.mxu0 0.0
        %474 = vmatpush1.msra.mxu0 0.0
        %475 = vmatprep.subr.mxu0 0.0
        %476 = vmatpush1.msra.mxu0 0.0
        %477 = vmatprep.subr.mxu0 0.0
        %478 = vmatpush1.msra.mxu0 0.0
        %479 = vmatprep.subr.mxu0 0.0
        %480 = vmatpush1.msra.mxu0 0.0
        %481 = vmatprep.subr.mxu0 0.0
        %482 = vmatpush1.msra.mxu0 0.0
        %483 = vmatprep.subr.mxu0 0.0
        %484 = vmatpush1.msra.mxu0 0.0
        %485 = vmatprep.subr.mxu0 0.0
        %486 = vmatpush1.msra.mxu0 0.0
        %487 = vmatprep.subr.mxu0 0.0
        %488 = vmatpush1.msra.mxu0 0.0
        %489 = vmatprep.subr.mxu0 0.0
        %490 = vmatpush1.msra.mxu0 0.0
        %491 = vmatprep.subr.mxu0 0.0
        %492 = vmatpush1.msra.mxu0 0.0
        %493 = vmatprep.subr.mxu0 0.0
        %494 = vmatpush1.msra.mxu0 0.0
        %495 = vmatprep.subr.mxu0 0.0
        %496 = vmatpush1.msra.mxu0 0.0
        %497 = vmatprep.subr.mxu0 0.0
        %498 = vmatpush1.msra.mxu0 0.0
        %499 = vmatprep.subr.mxu0 0.0
        %500 = vmatpush1.msra.mxu0 0.0
        %501 = vmatprep.subr.mxu0 0.0
        %502 = vmatpush1.msra.mxu0 0.0
        %503 = vmatprep.subr.mxu0 0.0
        %504 = vmatpush1.msra.mxu0 0.0
        %505 = vmatprep.subr.mxu0 0.0
        %506 = vmatpush1.msra.mxu0 0.0
        %507 = vmatprep.subr.mxu0 0.0
        %508 = vmatpush1.msra.mxu0 0.0
        %509 = vmatprep.subr.mxu0 0.0
        %510 = vmatpush1.msra.mxu0 0.0
        %511 = vmatprep.mubr.f32.mxu0 0.0
        %512 = vmatmul.mubr.f32.gmra.mrb[0].mxu0 %v304
        %v513 = vpop.f32.mrb[0].mxu0
        %v514 = vadd.f32 0.0, %v513
        %v515 = vpop.f32.mrb[0].mxu0
        %516 = vmatprep.mubr.f32.mxu0 0.0
        %517 = vmatmul.mubr.f32.gmra.mrb[0].mxu0 %v307
        %v518 = vpop.f32.mrb[0].mxu0
        %v519 = vadd.f32 0.0, %v518
        %v520 = vpop.f32.mrb[0].mxu0
        %521 = vmatprep.mubr.f32.mxu0 0.0
        %522 = vmatmul.mubr.f32.gmra.mrb[0].mxu0 %v310
        %v523 = vpop.f32.mrb[0].mxu0
        %v524 = vadd.f32 0.0, %v523
        %v525 = vpop.f32.mrb[0].mxu0
        %526 = vmatprep.mubr.f32.mxu0 0.0
        %527 = vmatmul.mubr.f32.gmra.mrb[0].mxu0 %v313
        %v528 = vpop.f32.mrb[0].mxu0
        %v529 = vadd.f32 0.0, %v528
        %v530 = vpop.f32.mrb[0].mxu0
        %531 = vmatprep.mubr.f32.mxu0 0.0
        %532 = vmatmul.mubr.f32.gmra.mrb[0].mxu0 %v316
        %v533 = vpop.f32.mrb[0].mxu0
        %v534 = vadd.f32 0.0, %v533
        %v535 = vpop.f32.mrb[0].mxu0
        %536 = vmatprep.mubr.f32.mxu0 0.0
        %537 = vmatmul.mubr.f32.gmra.mrb[0].mxu0 %v319
        %v538 = vpop.f32.mrb[0].mxu0
        %v539 = vadd.f32 0.0, %v538
        %v540 = vpop.f32.mrb[0].mxu0
        %541 = vmatprep.mubr.f32.mxu0 0.0
        %542 = vmatmul.mubr.f32.gmra.mrb[0].mxu0 %v322
        %v543 = vpop.f32.mrb[0].mxu0
        %v544 = vadd.f32 0.0, %v543
        %v545 = vpop.f32.mrb[0].mxu0
        %546 = vmatprep.mubr.f32.mxu0 0.0
        %547 = vmatmul.mubr.f32.gmra.mrb[0].mxu0 %v325
        %v548 = vpop.f32.mrb[0].mxu0
        %v549 = vadd.f32 0.0, %v548
        %v550 = vpop.f32.mrb[0].mxu0
        %551 = vmatprep.mubr.f32.mxu0 0.0
        %552 = vmatmul.mubr.f32.gmra.mrb[0].mxu0 %v328
        %v553 = vpop.f32.mrb[0].mxu0
        %v554 = vadd.f32 0.0, %v553
        %v555 = vpop.f32.mrb[0].mxu0
        %556 = vmatprep.mubr.f32.mxu0 0.0
        %557 = vmatmul.mubr.f32.gmra.mrb[0].mxu0 %v331
        %v558 = vpop.f32.mrb[0].mxu0
        %v559 = vadd.f32 0.0, %v558
        %v560 = vpop.f32.mrb[0].mxu0
        %561 = vmatprep.mubr.f32.mxu0 0.0
        %562 = vmatmul.mubr.f32.gmra.mrb[0].mxu0 %v334
        %v563 = vpop.f32.mrb[0].mxu0
        %v564 = vadd.f32 0.0, %v563
        %v565 = vpop.f32.mrb[0].mxu0
        %566 = vmatprep.mubr.f32.mxu0 0.0
        %567 = vmatmul.mubr.f32.gmra.mrb[0].mxu0 %v337
        %v568 = vpop.f32.mrb[0].mxu0
        %v569 = vadd.f32 0.0, %v568
        %v570 = vpop.f32.mrb[0].mxu0
        %571 = vmatprep.mubr.f32.mxu0 0.0
        %572 = vmatmul.mubr.f32.gmra.mrb[0].mxu0 %v340
        %v573 = vpop.f32.mrb[0].mxu0
        %v574 = vadd.f32 0.0, %v573
        %v575 = vpop.f32.mrb[0].mxu0
        %576 = vmatprep.mubr.f32.mxu0 0.0
        %577 = vmatmul.mubr.f32.gmra.mrb[0].mxu0 %v343
        %v578 = vpop.f32.mrb[0].mxu0
        %v579 = vadd.f32 0.0, %v578
        %v580 = vpop.f32.mrb[0].mxu0
        %581 = vmatprep.mubr.f32.mxu0 0.0
        %582 = vmatmul.mubr.f32.gmra.mrb[0].mxu0 %v346
        %v583 = vpop.f32.mrb[0].mxu0
        %v584 = vadd.f32 0.0, %v583
        %v585 = vpop.f32.mrb[0].mxu0
        %586 = vmatprep.mubr.f32.mxu0 0.0
        %587 = vmatmul.mubr.f32.gmra.mrb[0].mxu0 %v349
        %v588 = vpop.f32.mrb[0].mxu0
        %v589 = vadd.f32 0.0, %v588
        %v590 = vpop.f32.mrb[0].mxu0
        %591 = vmatprep.mubr.f32.mxu0 0.0
        %592 = vmatmul.mubr.f32.gmra.mrb[0].mxu0 %v352
        %v593 = vpop.f32.mrb[0].mxu0
        %v594 = vadd.f32 0.0, %v593
        %v595 = vpop.f32.mrb[0].mxu0
        %596 = vmatprep.mubr.f32.mxu0 0.0
        %597 = vmatmul.mubr.f32.gmra.mrb[0].mxu0 %v355
        %v598 = vpop.f32.mrb[0].mxu0
        %v599 = vadd.f32 0.0, %v598
        %v600 = vpop.f32.mrb[0].mxu0
        %601 = vmatprep.mubr.f32.mxu0 0.0
        %602 = vmatmul.mubr.f32.gmra.mrb[0].mxu0 %v358
        %v603 = vpop.f32.mrb[0].mxu0
        %v604 = vadd.f32 0.0, %v603
        %v605 = vpop.f32.mrb[0].mxu0
        %606 = vmatprep.mubr.f32.mxu0 0.0
        %607 = vmatmul.mubr.f32.gmra.mrb[0].mxu0 %v361
        %v608 = vpop.f32.mrb[0].mxu0
        %v609 = vadd.f32 0.0, %v608
        %v610 = vpop.f32.mrb[0].mxu0
        %611 = vmatprep.mubr.f32.mxu0 0.0
        %612 = vmatmul.mubr.f32.gmra.mrb[0].mxu0 %v364
        %v613 = vpop.f32.mrb[0].mxu0
        %v614 = vadd.f32 0.0, %v613
        %v615 = vpop.f32.mrb[0].mxu0
        %616 = vmatprep.mubr.f32.mxu0 0.0
        %617 = vmatmul.mubr.f32.gmra.mrb[0].mxu0 %v367
        %v618 = vpop.f32.mrb[0].mxu0
        %v619 = vadd.f32 0.0, %v618
        %v620 = vpop.f32.mrb[0].mxu0
        %621 = vmatprep.mubr.f32.mxu0 0.0
        %622 = vmatmul.mubr.f32.gmra.mrb[0].mxu0 %v370
        %v623 = vpop.f32.mrb[0].mxu0
        %v624 = vadd.f32 0.0, %v623
        %v625 = vpop.f32.mrb[0].mxu0
        %626 = vmatprep.mubr.f32.mxu0 0.0
        %627 = vmatmul.mubr.f32.gmra.mrb[0].mxu0 %v373
        %v628 = vpop.f32.mrb[0].mxu0
        %v629 = vadd.f32 0.0, %v628
        %v630 = vpop.f32.mrb[0].mxu0
        %631 = vmatprep.mubr.f32.mxu0 0.0
        %632 = vmatmul.mubr.f32.gmra.mrb[0].mxu0 %v376
        %v633 = vpop.f32.mrb[0].mxu0
        %v634 = vadd.f32 0.0, %v633
        %v635 = vpop.f32.mrb[0].mxu0
        %636 = vmatprep.mubr.f32.mxu0 0.0
        %637 = vmatmul.mubr.f32.gmra.mrb[0].mxu0 %v379
        %v638 = vpop.f32.mrb[0].mxu0
        %v639 = vadd.f32 0.0, %v638
        %v640 = vpop.f32.mrb[0].mxu0
        %641 = vmatprep.mubr.f32.mxu0 0.0
        %642 = vmatmul.mubr.f32.gmra.mrb[0].mxu0 %v382
        %v643 = vpop.f32.mrb[0].mxu0
        %v644 = vadd.f32 0.0, %v643
        %v645 = vpop.f32.mrb[0].mxu0
        %646 = vmatprep.mubr.f32.mxu0 0.0
        %647 = vmatmul.mubr.f32.gmra.mrb[0].mxu0 %v385
        %v648 = vpop.f32.mrb[0].mxu0
        %v649 = vadd.f32 0.0, %v648
        %v650 = vpop.f32.mrb[0].mxu0
        %651 = vmatprep.mubr.f32.mxu0 0.0
        %652 = vmatmul.mubr.f32.gmra.mrb[0].mxu0 %v388
        %v653 = vpop.f32.mrb[0].mxu0
        %v654 = vadd.f32 0.0, %v653
        %v655 = vpop.f32.mrb[0].mxu0
        %656 = vmatprep.mubr.f32.mxu0 0.0
        %657 = vmatmul.mubr.f32.gmra.mrb[0].mxu0 %v391
        %v658 = vpop.f32.mrb[0].mxu0
        %v659 = vadd.f32 0.0, %v658
        %v660 = vpop.f32.mrb[0].mxu0
        %661 = vmatprep.mubr.f32.mxu0 0.0
        %662 = vmatmul.mubr.f32.gmra.mrb[0].mxu0 %v394
        %v663 = vpop.f32.mrb[0].mxu0
        %v664 = vadd.f32 0.0, %v663
        %v665 = vpop.f32.mrb[0].mxu0
        %666 = vmatprep.mubr.f32.mxu0 0.0
        %667 = vmatmul.mubr.f32.gmra.mrb[0].mxu0 %v397
        %v668 = vpop.f32.mrb[0].mxu0
        %v669 = vadd.f32 0.0, %v668
        %v670 = vpop.f32.mrb[0].mxu0
        %671 = vmatprep.mubr.f32.mxu0 0.0
        %672 = vmatmul.mubr.f32.gmra.mrb[0].mxu0 %v400
        %v673 = vpop.f32.mrb[0].mxu0
        %v674 = vadd.f32 0.0, %v673
        %v675 = vpop.f32.mrb[0].mxu0
        %676 = vmatprep.mubr.f32.mxu0 0.0
        %677 = vmatmul.mubr.f32.gmra.mrb[0].mxu0 %v403
        %v678 = vpop.f32.mrb[0].mxu0
        %v679 = vadd.f32 0.0, %v678
        %v680 = vpop.f32.mrb[0].mxu0
        %681 = vmatprep.mubr.f32.mxu0 0.0
        %682 = vmatmul.mubr.f32.gmra.mrb[0].mxu0 %v406
        %v683 = vpop.f32.mrb[0].mxu0
        %v684 = vadd.f32 0.0, %v683
        %v685 = vpop.f32.mrb[0].mxu0
        %686 = vmatprep.mubr.f32.mxu0 0.0
        %687 = vmatmul.mubr.f32.gmra.mrb[0].mxu0 %v409
        %v688 = vpop.f32.mrb[0].mxu0
        %v689 = vadd.f32 0.0, %v688
        %v690 = vpop.f32.mrb[0].mxu0
        %691 = vmatprep.mubr.f32.mxu0 0.0
        %692 = vmatmul.mubr.f32.gmra.mrb[0].mxu0 %v412
        %v693 = vpop.f32.mrb[0].mxu0
        %v694 = vadd.f32 0.0, %v693
        %v695 = vpop.f32.mrb[0].mxu0
        %696 = vmatprep.mubr.f32.mxu0 0.0
        %697 = vmatmul.mubr.f32.gmra.mrb[0].mxu0 %v415
        %v698 = vpop.f32.mrb[0].mxu0
        %v699 = vadd.f32 0.0, %v698
        %v700 = vpop.f32.mrb[0].mxu0
        %701 = vmatprep.mubr.f32.mxu0 0.0
        %702 = vmatmul.mubr.f32.gmra.mrb[0].mxu0 %v418
        %v703 = vpop.f32.mrb[0].mxu0
        %v704 = vadd.f32 0.0, %v703
        %v705 = vpop.f32.mrb[0].mxu0
        %706 = vmatprep.mubr.f32.mxu0 0.0
        %707 = vmatmul.mubr.f32.gmra.mrb[0].mxu0 %v421
        %v708 = vpop.f32.mrb[0].mxu0
        %v709 = vadd.f32 0.0, %v708
        %v710 = vpop.f32.mrb[0].mxu0
        %711 = vmatprep.mubr.f32.mxu0 0.0
        %712 = vmatmul.mubr.f32.gmra.mrb[0].mxu0 %v424
        %v713 = vpop.f32.mrb[0].mxu0
        %v714 = vadd.f32 0.0, %v713
        %v715 = vpop.f32.mrb[0].mxu0
        %716 = vmatprep.mubr.f32.mxu0 0.0
        %717 = vmatmul.mubr.f32.gmra.mrb[0].mxu0 %v427
        %v718 = vpop.f32.mrb[0].mxu0
        %v719 = vadd.f32 0.0, %v718
        %v720 = vpop.f32.mrb[0].mxu0
        %721 = vmatprep.mubr.f32.mxu0 0.0
        %722 = vmatmul.mubr.f32.gmra.mrb[0].mxu0 %v430
        %v723 = vpop.f32.mrb[0].mxu0
        %v724 = vadd.f32 0.0, %v723
        %v725 = vpop.f32.mrb[0].mxu0
        %726 = vmatprep.mubr.f32.mxu0 0.0
        %727 = vmatmul.mubr.f32.gmra.mrb[0].mxu0 %v433
        %v728 = vpop.f32.mrb[0].mxu0
        %v729 = vadd.f32 0.0, %v728
        %v730 = vpop.f32.mrb[0].mxu0
        %731 = vmatprep.mubr.f32.mxu0 0.0
        %732 = vmatmul.mubr.f32.gmra.mrb[0].mxu0 %v436
        %v733 = vpop.f32.mrb[0].mxu0
        %v734 = vadd.f32 0.0, %v733
        %v735 = vpop.f32.mrb[0].mxu0
        %736 = vmatprep.mubr.f32.mxu0 0.0
        %737 = vmatmul.mubr.f32.gmra.mrb[0].mxu0 %v439
        %v738 = vpop.f32.mrb[0].mxu0
        %v739 = vadd.f32 0.0, %v738
        %v740 = vpop.f32.mrb[0].mxu0
        %741 = vmatprep.mubr.f32.mxu0 0.0
        %742 = vmatmul.mubr.f32.gmra.mrb[0].mxu0 %v442
        %v743 = vpop.f32.mrb[0].mxu0
        %v744 = vadd.f32 0.0, %v743
        %v745 = vpop.f32.mrb[0].mxu0
        %746 = vmatprep.mubr.f32.mxu0 0.0
        %747 = vmatmul.mubr.f32.gmra.mrb[0].mxu0 %v445
        %v748 = vpop.f32.mrb[0].mxu0
        %v749 = vadd.f32 0.0, %v748
        %v750 = vpop.f32.mrb[0].mxu0
        %751 = vdwg.mxu0
        %v752 = vmax.f32 %v514, %v534
        %v753 = vmax.f32 %v752, %v554
        %v754 = vmax.f32 %v753, %v574
        %v755 = vmax.f32 %v519, %v539
        %v756 = vmax.f32 %v755, %v559
        %v757 = vmax.f32 %v756, %v579
        %v758 = vmax.f32 %v524, %v544
        %v759 = vmax.f32 %v758, %v564
        %v760 = vmax.f32 %v759, %v584
        %v761 = vmax.f32 %v529, %v549
        %v762 = vmax.f32 %v761, %v569
        %v763 = vmax.f32 %v762, %v589
        %v764 = vsub.f32 %v514, %v754
        %v765 = vsub.f32 %v519, %v757
        %v766 = vsub.f32 %v524, %v760
        %v767 = vsub.f32 %v529, %v763
        %v768 = vsub.f32 %v534, %v754
        %v769 = vsub.f32 %v539, %v757
        %v770 = vsub.f32 %v544, %v760
        %v771 = vsub.f32 %v549, %v763
        %v772 = vsub.f32 %v554, %v754
        %v773 = vsub.f32 %v559, %v757
        %v774 = vsub.f32 %v564, %v760
        %v775 = vsub.f32 %v569, %v763
        %v776 = vsub.f32 %v574, %v754
        %v777 = vsub.f32 %v579, %v757
        %v778 = vsub.f32 %v584, %v760
        %v779 = vsub.f32 %v589, %v763
        %v780 = vmul.f32 %v764, 1.442695
        %v781 = vpow.pop %v780
        %v782 = vmul.f32 %v765, 1.442695
        %v783 = vpow.pop %v782
        %v784 = vmul.f32 %v766, 1.442695
        %v785 = vpow.pop %v784
        %v786 = vmul.f32 %v767, 1.442695
        %v787 = vpow.pop %v786
        %v788 = vmul.f32 %v768, 1.442695
        %v789 = vpow.pop %v788
        %v790 = vmul.f32 %v769, 1.442695
        %v791 = vpow.pop %v790
        %v792 = vmul.f32 %v770, 1.442695
        %v793 = vpow.pop %v792
        %v794 = vmul.f32 %v771, 1.442695
        %v795 = vpow.pop %v794
        %v796 = vmul.f32 %v772, 1.442695
        %v797 = vpow.pop %v796
        %v798 = vmul.f32 %v773, 1.442695
        %v799 = vpow.pop %v798
        %v800 = vmul.f32 %v774, 1.442695
        %v801 = vpow.pop %v800
        %v802 = vmul.f32 %v775, 1.442695
        %v803 = vpow.pop %v802
        %v804 = vmul.f32 %v776, 1.442695
        %v805 = vpow.pop %v804
        %v806 = vmul.f32 %v777, 1.442695
        %v807 = vpow.pop %v806
        %v808 = vmul.f32 %v778, 1.442695
        %v809 = vpow.pop %v808
        %v810 = vmul.f32 %v779, 1.442695
        %v811 = vpow.pop %v810
        %v812 = vadd.f32 %v781, %v789
        %v813 = vadd.f32 %v812, %v797
        %v814 = vadd.f32 %v813, %v805
        %v815 = vadd.f32 %v783, %v791
        %v816 = vadd.f32 %v815, %v799
        %v817 = vadd.f32 %v816, %v807
        %v818 = vadd.f32 %v785, %v793
        %v819 = vadd.f32 %v818, %v801
        %v820 = vadd.f32 %v819, %v809
        %v821 = vadd.f32 %v787, %v795
        %v822 = vadd.f32 %v821, %v803
        %v823 = vadd.f32 %v822, %v811
        %v824 = vrcp.pop %v814
        %v825 = vmul.f32 %v781, %v824
        %v826 = vrcp.pop %v817
        %v827 = vmul.f32 %v783, %v826
        %v828 = vrcp.pop %v820
        %v829 = vmul.f32 %v785, %v828
        %v830 = vrcp.pop %v823
        %v831 = vmul.f32 %v787, %v830
        %v832 = vmul.f32 %v789, %v824
        %v833 = vmul.f32 %v791, %v826
        %v834 = vmul.f32 %v793, %v828
        %v835 = vmul.f32 %v795, %v830
        %v836 = vmul.f32 %v797, %v824
        %v837 = vmul.f32 %v799, %v826
        %v838 = vmul.f32 %v801, %v828
        %v839 = vmul.f32 %v803, %v830
        %v840 = vmul.f32 %v805, %v824
        %v841 = vmul.f32 %v807, %v826
        %v842 = vmul.f32 %v809, %v828
        %v843 = vmul.f32 %v811, %v830
        %v844 = vmul.f32 %v825, 0.17677669
        %v845 = vmul.f32 %v827, 0.17677669
        %v846 = vmul.f32 %v829, 0.17677669
        %v847 = vmul.f32 %v831, 0.17677669
        %v848 = vmul.f32 %v832, 0.17677669
        %v849 = vmul.f32 %v833, 0.17677669
        %v850 = vmul.f32 %v834, 0.17677669
        %v851 = vmul.f32 %v835, 0.17677669
        %v852 = vmul.f32 %v836, 0.17677669
        %v853 = vmul.f32 %v837, 0.17677669
        %v854 = vmul.f32 %v838, 0.17677669
        %v855 = vmul.f32 %v839, 0.17677669
        %v856 = vmul.f32 %v840, 0.17677669
        %v857 = vmul.f32 %v841, 0.17677669
        %v858 = vmul.f32 %v842, 0.17677669
        %v859 = vmul.f32 %v843, 0.17677669
        %860 = vmax.xlane.f32.xlu0 %v594
        %v861 = vpop.xlane.xlu0 %860
        %862 = vmax.xlane.f32.xlu0 %v599
        %v863 = vpop.xlane.xlu0 %862
        %864 = vmax.xlane.f32.xlu0 %v604
        %v865 = vpop.xlane.xlu0 %864
        %866 = vmax.xlane.f32.xlu0 %v609
        %v867 = vpop.xlane.xlu0 %866
        %868 = vmax.xlane.f32.xlu0 %v614
        %v869 = vpop.xlane.xlu0 %868
        %870 = vmax.xlane.f32.xlu0 %v619
        %v871 = vpop.xlane.xlu0 %870
        %872 = vmax.xlane.f32.xlu0 %v624
        %v873 = vpop.xlane.xlu0 %872
        %874 = vmax.xlane.f32.xlu0 %v629
        %v875 = vpop.xlane.xlu0 %874
        %876 = vmax.xlane.f32.xlu0 %v634
        %v877 = vpop.xlane.xlu0 %876
        %878 = vmax.xlane.f32.xlu0 %v639
        %v879 = vpop.xlane.xlu0 %878
        %880 = vmax.xlane.f32.xlu0 %v644
        %v881 = vpop.xlane.xlu0 %880
        %882 = vmax.xlane.f32.xlu0 %v649
        %v883 = vpop.xlane.xlu0 %882
        %884 = vmax.xlane.f32.xlu0 %v654
        %v885 = vpop.xlane.xlu0 %884
        %886 = vmax.xlane.f32.xlu0 %v659
        %v887 = vpop.xlane.xlu0 %886
        %888 = vmax.xlane.f32.xlu0 %v664
        %v889 = vpop.xlane.xlu0 %888
        %890 = vmax.xlane.f32.xlu0 %v669
        %v891 = vpop.xlane.xlu0 %890
        %v892 = vmax.f32 %v861, %v863
        %v893 = vmax.f32 %v892, %v865
        %v894 = vmax.f32 %v893, %v867
        %v895 = vrot.slane %v894, 4
        %v896 = vmax.f32 %v894, %v895
        %v897 = vrot.slane %v896, 2
        %v898 = vmax.f32 %v896, %v897
        %v899 = vrot.slane %v898, 1
        %v900 = vmax.f32 %v898, %v899
        %v901 = vmax.f32 %v869, %v871
        %v902 = vmax.f32 %v901, %v873
        %v903 = vmax.f32 %v902, %v875
        %v904 = vrot.slane %v903, 4
        %v905 = vmax.f32 %v903, %v904
        %v906 = vrot.slane %v905, 2
        %v907 = vmax.f32 %v905, %v906
        %v908 = vrot.slane %v907, 1
        %v909 = vmax.f32 %v907, %v908
        %v910 = vmax.f32 %v877, %v879
        %v911 = vmax.f32 %v910, %v881
        %v912 = vmax.f32 %v911, %v883
        %v913 = vrot.slane %v912, 4
        %v914 = vmax.f32 %v912, %v913
        %v915 = vrot.slane %v914, 2
        %v916 = vmax.f32 %v914, %v915
        %v917 = vrot.slane %v916, 1
        %v918 = vmax.f32 %v916, %v917
        %v919 = vmax.f32 %v885, %v887
        %v920 = vmax.f32 %v919, %v889
        %v921 = vmax.f32 %v920, %v891
        %v922 = vrot.slane %v921, 4
        %v923 = vmax.f32 %v921, %v922
        %v924 = vrot.slane %v923, 2
        %v925 = vmax.f32 %v923, %v924
        %v926 = vrot.slane %v925, 1
        %v927 = vmax.f32 %v925, %v926
        %v928 = vsub.f32 %v594, %v900
        %v929 = vsub.f32 %v599, %v900
        %v930 = vsub.f32 %v604, %v900
        %v931 = vsub.f32 %v609, %v900
        %v932 = vsub.f32 %v614, %v909
        %v933 = vsub.f32 %v619, %v909
        %v934 = vsub.f32 %v624, %v909
        %v935 = vsub.f32 %v629, %v909
        %v936 = vsub.f32 %v634, %v918
        %v937 = vsub.f32 %v639, %v918
        %v938 = vsub.f32 %v644, %v918
        %v939 = vsub.f32 %v649, %v918
        %v940 = vsub.f32 %v654, %v927
        %v941 = vsub.f32 %v659, %v927
        %v942 = vsub.f32 %v664, %v927
        %v943 = vsub.f32 %v669, %v927
        %v944 = vmul.f32 %v928, 1.442695
        %v945 = vpow.pop %v944
        %v946 = vmul.f32 %v929, 1.442695
        %v947 = vpow.pop %v946
        %v948 = vmul.f32 %v930, 1.442695
        %v949 = vpow.pop %v948
        %v950 = vmul.f32 %v931, 1.442695
        %v951 = vpow.pop %v950
        %v952 = vmul.f32 %v932, 1.442695
        %v953 = vpow.pop %v952
        %v954 = vmul.f32 %v933, 1.442695
        %v955 = vpow.pop %v954
        %v956 = vmul.f32 %v934, 1.442695
        %v957 = vpow.pop %v956
        %v958 = vmul.f32 %v935, 1.442695
        %v959 = vpow.pop %v958
        %v960 = vmul.f32 %v936, 1.442695
        %v961 = vpow.pop %v960
        %v962 = vmul.f32 %v937, 1.442695
        %v963 = vpow.pop %v962
        %v964 = vmul.f32 %v938, 1.442695
        %v965 = vpow.pop %v964
        %v966 = vmul.f32 %v939, 1.442695
        %v967 = vpow.pop %v966
        %v968 = vmul.f32 %v940, 1.442695
        %v969 = vpow.pop %v968
        %v970 = vmul.f32 %v941, 1.442695
        %v971 = vpow.pop %v970
        %v972 = vmul.f32 %v942, 1.442695
        %v973 = vpow.pop %v972
        %v974 = vmul.f32 %v943, 1.442695
        %v975 = vpow.pop %v974
        %976 = vadd.xlane.f32.xlu0 %v945
        %v977 = vpop.xlane.xlu0 %976
        %978 = vadd.xlane.f32.xlu0 %v947
        %v979 = vpop.xlane.xlu0 %978
        %980 = vadd.xlane.f32.xlu0 %v949
        %v981 = vpop.xlane.xlu0 %980
        %982 = vadd.xlane.f32.xlu0 %v951
        %v983 = vpop.xlane.xlu0 %982
        %984 = vadd.xlane.f32.xlu0 %v953
        %v985 = vpop.xlane.xlu0 %984
        %986 = vadd.xlane.f32.xlu0 %v955
        %v987 = vpop.xlane.xlu0 %986
        %988 = vadd.xlane.f32.xlu0 %v957
        %v989 = vpop.xlane.xlu0 %988
        %990 = vadd.xlane.f32.xlu0 %v959
        %v991 = vpop.xlane.xlu0 %990
        %992 = vadd.xlane.f32.xlu0 %v961
        %v993 = vpop.xlane.xlu0 %992
        %994 = vadd.xlane.f32.xlu0 %v963
        %v995 = vpop.xlane.xlu0 %994
        %996 = vadd.xlane.f32.xlu0 %v965
        %v997 = vpop.xlane.xlu0 %996
        %998 = vadd.xlane.f32.xlu0 %v967
        %v999 = vpop.xlane.xlu0 %998
        %1000 = vadd.xlane.f32.xlu0 %v969
        %v1001 = vpop.xlane.xlu0 %1000
        %1002 = vadd.xlane.f32.xlu0 %v971
        %v1003 = vpop.xlane.xlu0 %1002
        %1004 = vadd.xlane.f32.xlu0 %v973
        %v1005 = vpop.xlane.xlu0 %1004
        %1006 = vadd.xlane.f32.xlu0 %v975
        %v1007 = vpop.xlane.xlu0 %1006
        %v1008 = vadd.f32 %v977, %v979
        %v1009 = vadd.f32 %v1008, %v981
        %v1010 = vadd.f32 %v1009, %v983
        %v1011 = vrot.slane %v1010, 4
        %v1012 = vadd.f32 %v1010, %v1011
        %v1013 = vrot.slane %v1012, 2
        %v1014 = vadd.f32 %v1012, %v1013
        %v1015 = vrot.slane %v1014, 1
        %v1016 = vadd.f32 %v1014, %v1015
        %v1017 = vadd.f32 %v985, %v987
        %v1018 = vadd.f32 %v1017, %v989
        %v1019 = vadd.f32 %v1018, %v991
        %v1020 = vrot.slane %v1019, 4
        %v1021 = vadd.f32 %v1019, %v1020
        %v1022 = vrot.slane %v1021, 2
        %v1023 = vadd.f32 %v1021, %v1022
        %v1024 = vrot.slane %v1023, 1
        %v1025 = vadd.f32 %v1023, %v1024
        %v1026 = vadd.f32 %v993, %v995
        %v1027 = vadd.f32 %v1026, %v997
        %v1028 = vadd.f32 %v1027, %v999
        %v1029 = vrot.slane %v1028, 4
        %v1030 = vadd.f32 %v1028, %v1029
        %v1031 = vrot.slane %v1030, 2
        %v1032 = vadd.f32 %v1030, %v1031
        %v1033 = vrot.slane %v1032, 1
        %v1034 = vadd.f32 %v1032, %v1033
        %v1035 = vadd.f32 %v1001, %v1003
        %v1036 = vadd.f32 %v1035, %v1005
        %v1037 = vadd.f32 %v1036, %v1007
        %v1038 = vrot.slane %v1037, 4
        %v1039 = vadd.f32 %v1037, %v1038
        %v1040 = vrot.slane %v1039, 2
        %v1041 = vadd.f32 %v1039, %v1040
        %v1042 = vrot.slane %v1041, 1
        %v1043 = vadd.f32 %v1041, %v1042
        %v1044 = vrcp.pop %v1016
        %v1045 = vmul.f32 %v945, %v1044
        %v1046 = vmul.f32 %v947, %v1044
        %v1047 = vmul.f32 %v949, %v1044
        %v1048 = vmul.f32 %v951, %v1044
        %v1049 = vrcp.pop %v1025
        %v1050 = vmul.f32 %v953, %v1049
        %v1051 = vmul.f32 %v955, %v1049
        %v1052 = vmul.f32 %v957, %v1049
        %v1053 = vmul.f32 %v959, %v1049
        %v1054 = vrcp.pop %v1034
        %v1055 = vmul.f32 %v961, %v1054
        %v1056 = vmul.f32 %v963, %v1054
        %v1057 = vmul.f32 %v965, %v1054
        %v1058 = vmul.f32 %v967, %v1054
        %v1059 = vrcp.pop %v1043
        %v1060 = vmul.f32 %v969, %v1059
        %v1061 = vmul.f32 %v971, %v1059
        %v1062 = vmul.f32 %v973, %v1059
        %v1063 = vmul.f32 %v975, %v1059
        %v1064 = vld [vmem:[%s4] sm:$0xf]
        %v1065 = vld [vmem:[%s5] sm:$0xff]
        %v1066 = vld [vmem:[%s5 + $0x8] sm:$0xff]
        %v1067 = vld [vmem:[%s5 + $0x10] sm:$0xff]
        %v1068 = vld [vmem:[%s5 + $0x18] sm:$0xff]
        %v1069 = vld [vmem:[%s5 + $0x20] sm:$0xff]
        %v1070 = vld [vmem:[%s5 + $0x28] sm:$0xff]
        %v1071 = vld [vmem:[%s5 + $0x30] sm:$0xff]
        %v1072 = vld [vmem:[%s5 + $0x38] sm:$0xff]
        %v1073 = vld [vmem:[%s5 + $0x40] sm:$0xff]
        %v1074 = vld [vmem:[%s5 + $0x48] sm:$0xff]
        %v1075 = vld [vmem:[%s5 + $0x50] sm:$0xff]
        %v1076 = vld [vmem:[%s5 + $0x58] sm:$0xff]
        %v1077 = vld [vmem:[%s5 + $0x60] sm:$0xff]
        %v1078 = vld [vmem:[%s5 + $0x68] sm:$0xff]
        %v1079 = vld [vmem:[%s5 + $0x70] sm:$0xff]
        %v1080 = vld [vmem:[%s5 + $0x78] sm:$0xff]
        %1081 = vmatprep.subr.mxu0 0.0
        %1082 = vmatpush1.xpose.msra.mxu0 %v674
        %1083 = vmatprep.subr.mxu0 0.0
        %1084 = vmatpush1.xpose.msra.mxu0 %v679
        %1085 = vmatprep.subr.mxu0 0.0
        %1086 = vmatpush1.xpose.msra.mxu0 %v684
        %1087 = vmatprep.subr.mxu0 0.0
        %1088 = vmatpush1.xpose.msra.mxu0 %v689
        %1089 = vmatprep.subr.mxu0 0.0
        %1090 = vmatpush1.xpose.msra.mxu0 %v694
        %1091 = vmatprep.subr.mxu0 0.0
        %1092 = vmatpush1.xpose.msra.mxu0 %v699
        %1093 = vmatprep.subr.mxu0 0.0
        %1094 = vmatpush1.xpose.msra.mxu0 %v704
        %1095 = vmatprep.subr.mxu0 0.0
        %1096 = vmatpush1.xpose.msra.mxu0 %v709
        %1097 = vmatprep.subr.mxu0 0.0
        %1098 = vmatpush1.xpose.msra.mxu0 %v714
        %1099 = vmatprep.subr.mxu0 0.0
        %1100 = vmatpush1.xpose.msra.mxu0 %v719
        %1101 = vmatprep.subr.mxu0 0.0
        %1102 = vmatpush1.xpose.msra.mxu0 %v724
        %1103 = vmatprep.subr.mxu0 0.0
        %1104 = vmatpush1.xpose.msra.mxu0 %v729
        %1105 = vmatprep.subr.mxu0 0.0
        %1106 = vmatpush1.xpose.msra.mxu0 %v734
        %1107 = vmatprep.subr.mxu0 0.0
        %1108 = vmatpush1.xpose.msra.mxu0 %v739
        %1109 = vmatprep.subr.mxu0 0.0
        %1110 = vmatpush1.xpose.msra.mxu0 %v744
        %1111 = vmatprep.subr.mxu0 0.0
        %1112 = vmatpush1.xpose.msra.mxu0 %v749
        %1113 = vmatprep.subr.mxu0 0.0
        %1114 = vmatpush1.xpose.msra.mxu0 0.0
        %1115 = vmatprep.subr.mxu0 0.0
        %1116 = vmatpush1.xpose.msra.mxu0 0.0
        %1117 = vmatprep.subr.mxu0 0.0
        %1118 = vmatpush1.xpose.msra.mxu0 0.0
        %1119 = vmatprep.subr.mxu0 0.0
        %1120 = vmatpush1.xpose.msra.mxu0 0.0
        %1121 = vmatprep.subr.mxu0 0.0
        %1122 = vmatpush1.xpose.msra.mxu0 0.0
        %1123 = vmatprep.subr.mxu0 0.0
        %1124 = vmatpush1.xpose.msra.mxu0 0.0
        %1125 = vmatprep.subr.mxu0 0.0
        %1126 = vmatpush1.xpose.msra.mxu0 0.0
        %1127 = vmatprep.subr.mxu0 0.0
        %1128 = vmatpush1.xpose.msra.mxu0 0.0
        %1129 = vmatprep.subr.mxu0 0.0
        %1130 = vmatpush1.xpose.msra.mxu0 0.0
        %1131 = vmatprep.subr.mxu0 0.0
        %1132 = vmatpush1.xpose.msra.mxu0 0.0
        %1133 = vmatprep.subr.mxu0 0.0
        %1134 = vmatpush1.xpose.msra.mxu0 0.0
        %1135 = vmatprep.subr.mxu0 0.0
        %1136 = vmatpush1.xpose.msra.mxu0 0.0
        %1137 = vmatprep.subr.mxu0 0.0
        %1138 = vmatpush1.xpose.msra.mxu0 0.0
        %1139 = vmatprep.subr.mxu0 0.0
        %1140 = vmatpush1.xpose.msra.mxu0 0.0
        %1141 = vmatprep.subr.mxu0 0.0
        %1142 = vmatpush1.xpose.msra.mxu0 0.0
        %1143 = vmatprep.subr.mxu0 0.0
        %1144 = vmatpush1.xpose.msra.mxu0 0.0
        %1145 = vmatprep.mubr.f32.mxu0 0.0
        %1146 = vmatmul.mubr.f32.gmra.mrb[0].mxu0 %v1045
        %v1147 = vpop.f32.mrb[0].mxu0
        %v1148 = vadd.f32 0.0, %v1147
        %v1149 = vpop.f32.mrb[0].mxu0
        %1150 = vmatprep.mubr.f32.mxu0 0.0
        %1151 = vmatmul.mubr.f32.gmra.mrb[0].mxu0 %v1046
        %v1152 = vpop.f32.mrb[0].mxu0
        %v1153 = vadd.f32 0.0, %v1152
        %v1154 = vpop.f32.mrb[0].mxu0
        %1155 = vmatprep.mubr.f32.mxu0 0.0
        %1156 = vmatmul.mubr.f32.gmra.mrb[0].mxu0 %v1047
        %v1157 = vpop.f32.mrb[0].mxu0
        %v1158 = vadd.f32 0.0, %v1157
        %v1159 = vpop.f32.mrb[0].mxu0
        %1160 = vmatprep.mubr.f32.mxu0 0.0
        %1161 = vmatmul.mubr.f32.gmra.mrb[0].mxu0 %v1048
        %v1162 = vpop.f32.mrb[0].mxu0
        %v1163 = vadd.f32 0.0, %v1162
        %v1164 = vpop.f32.mrb[0].mxu0
        %1165 = vmatprep.mubr.f32.mxu0 0.0
        %1166 = vmatmul.mubr.f32.gmra.mrb[0].mxu0 %v1050
        %v1167 = vpop.f32.mrb[0].mxu0
        %v1168 = vadd.f32 0.0, %v1167
        %v1169 = vpop.f32.mrb[0].mxu0
        %1170 = vmatprep.mubr.f32.mxu0 0.0
        %1171 = vmatmul.mubr.f32.gmra.mrb[0].mxu0 %v1051
        %v1172 = vpop.f32.mrb[0].mxu0
        %v1173 = vadd.f32 0.0, %v1172
        %v1174 = vpop.f32.mrb[0].mxu0
        %1175 = vmatprep.mubr.f32.mxu0 0.0
        %1176 = vmatmul.mubr.f32.gmra.mrb[0].mxu0 %v1052
        %v1177 = vpop.f32.mrb[0].mxu0
        %v1178 = vadd.f32 0.0, %v1177
        %v1179 = vpop.f32.mrb[0].mxu0
        %1180 = vmatprep.mubr.f32.mxu0 0.0
        %1181 = vmatmul.mubr.f32.gmra.mrb[0].mxu0 %v1053
        %v1182 = vpop.f32.mrb[0].mxu0
        %v1183 = vadd.f32 0.0, %v1182
        %v1184 = vpop.f32.mrb[0].mxu0
        %1185 = vmatprep.mubr.f32.mxu0 0.0
        %1186 = vmatmul.mubr.f32.gmra.mrb[0].mxu0 %v1055
        %v1187 = vpop.f32.mrb[0].mxu0
        %v1188 = vadd.f32 0.0, %v1187
        %v1189 = vpop.f32.mrb[0].mxu0
        %1190 = vmatprep.mubr.f32.mxu0 0.0
        %1191 = vmatmul.mubr.f32.gmra.mrb[0].mxu0 %v1056
        %v1192 = vpop.f32.mrb[0].mxu0
        %v1193 = vadd.f32 0.0, %v1192
        %v1194 = vpop.f32.mrb[0].mxu0
        %1195 = vmatprep.mubr.f32.mxu0 0.0
        %1196 = vmatmul.mubr.f32.gmra.mrb[0].mxu0 %v1057
        %v1197 = vpop.f32.mrb[0].mxu0
        %v1198 = vadd.f32 0.0, %v1197
        %v1199 = vpop.f32.mrb[0].mxu0
        %1200 = vmatprep.mubr.f32.mxu0 0.0
        %1201 = vmatmul.mubr.f32.gmra.mrb[0].mxu0 %v1058
        %v1202 = vpop.f32.mrb[0].mxu0
        %v1203 = vadd.f32 0.0, %v1202
        %v1204 = vpop.f32.mrb[0].mxu0
        %1205 = vmatprep.mubr.f32.mxu0 0.0
        %1206 = vmatmul.mubr.f32.gmra.mrb[0].mxu0 %v1060
        %v1207 = vpop.f32.mrb[0].mxu0
        %v1208 = vadd.f32 0.0, %v1207
        %v1209 = vpop.f32.mrb[0].mxu0
        %1210 = vmatprep.mubr.f32.mxu0 0.0
        %1211 = vmatmul.mubr.f32.gmra.mrb[0].mxu0 %v1061
        %v1212 = vpop.f32.mrb[0].mxu0
        %v1213 = vadd.f32 0.0, %v1212
        %v1214 = vpop.f32.mrb[0].mxu0
        %1215 = vmatprep.mubr.f32.mxu0 0.0
        %1216 = vmatmul.mubr.f32.gmra.mrb[0].mxu0 %v1062
        %v1217 = vpop.f32.mrb[0].mxu0
        %v1218 = vadd.f32 0.0, %v1217
        %v1219 = vpop.f32.mrb[0].mxu0
        %1220 = vmatprep.mubr.f32.mxu0 0.0
        %1221 = vmatmul.mubr.f32.gmra.mrb[0].mxu0 %v1063
        %v1222 = vpop.f32.mrb[0].mxu0
        %v1223 = vadd.f32 0.0, %v1222
        %v1224 = vpop.f32.mrb[0].mxu0
        %1225 = vdwg.mxu0
        %v1226 = vmul.f32 %v1148, %v1065
        %v1227 = vmul.f32 %v1153, %v1066
        %v1228 = vmul.f32 %v1158, %v1067
        %v1229 = vmul.f32 %v1163, %v1068
        %v1230 = vmul.f32 %v1168, %v1069
        %v1231 = vmul.f32 %v1173, %v1070
        %v1232 = vmul.f32 %v1178, %v1071
        %v1233 = vmul.f32 %v1183, %v1072
        %v1234 = vmul.f32 %v1188, %v1073
        %v1235 = vmul.f32 %v1193, %v1074
        %v1236 = vmul.f32 %v1198, %v1075
        %v1237 = vmul.f32 %v1203, %v1076
        %v1238 = vmul.f32 %v1208, %v1077
        %v1239 = vmul.f32 %v1213, %v1078
        %v1240 = vmul.f32 %v1218, %v1079
        %v1241 = vmul.f32 %v1223, %v1080
        %1242 = vmatprep.subr.mxu0 0.0
        %1243 = vmatpush1.xpose.msra.mxu0 %v1064
        %1244 = vmatprep.subr.mxu0 0.0
        %1245 = vmatpush1.xpose.msra.mxu0 0.0
        %1246 = vmatprep.subr.mxu0 0.0
        %1247 = vmatpush1.xpose.msra.mxu0 0.0
        %1248 = vmatprep.subr.mxu0 0.0
        %1249 = vmatpush1.xpose.msra.mxu0 0.0
        %1250 = vmatprep.subr.mxu0 0.0
        %1251 = vmatpush1.xpose.msra.mxu0 0.0
        %1252 = vmatprep.subr.mxu0 0.0
        %1253 = vmatpush1.xpose.msra.mxu0 0.0
        %1254 = vmatprep.subr.mxu0 0.0
        %1255 = vmatpush1.xpose.msra.mxu0 0.0
        %1256 = vmatprep.subr.mxu0 0.0
        %1257 = vmatpush1.xpose.msra.mxu0 0.0
        %1258 = vmatprep.subr.mxu0 0.0
        %1259 = vmatpush1.xpose.msra.mxu0 0.0
        %1260 = vmatprep.subr.mxu0 0.0
        %1261 = vmatpush1.xpose.msra.mxu0 0.0
        %1262 = vmatprep.subr.mxu0 0.0
        %1263 = vmatpush1.xpose.msra.mxu0 0.0
        %1264 = vmatprep.subr.mxu0 0.0
        %1265 = vmatpush1.xpose.msra.mxu0 0.0
        %1266 = vmatprep.subr.mxu0 0.0
        %1267 = vmatpush1.xpose.msra.mxu0 0.0
        %1268 = vmatprep.subr.mxu0 0.0
        %1269 = vmatpush1.xpose.msra.mxu0 0.0
        %1270 = vmatprep.subr.mxu0 0.0
        %1271 = vmatpush1.xpose.msra.mxu0 0.0
        %1272 = vmatprep.subr.mxu0 0.0
        %1273 = vmatpush1.xpose.msra.mxu0 0.0
        %1274 = vmatprep.subr.mxu0 0.0
        %1275 = vmatpush1.xpose.msra.mxu0 0.0
        %1276 = vmatprep.subr.mxu0 0.0
        %1277 = vmatpush1.xpose.msra.mxu0 0.0
        %1278 = vmatprep.subr.mxu0 0.0
        %1279 = vmatpush1.xpose.msra.mxu0 0.0
        %1280 = vmatprep.subr.mxu0 0.0
        %1281 = vmatpush1.xpose.msra.mxu0 0.0
        %1282 = vmatprep.subr.mxu0 0.0
        %1283 = vmatpush1.xpose.msra.mxu0 0.0
        %1284 = vmatprep.subr.mxu0 0.0
        %1285 = vmatpush1.xpose.msra.mxu0 0.0
        %1286 = vmatprep.subr.mxu0 0.0
        %1287 = vmatpush1.xpose.msra.mxu0 0.0
        %1288 = vmatprep.subr.mxu0 0.0
        %1289 = vmatpush1.xpose.msra.mxu0 0.0
        %1290 = vmatprep.subr.mxu0 0.0
        %1291 = vmatpush1.xpose.msra.mxu0 0.0
        %1292 = vmatprep.subr.mxu0 0.0
        %1293 = vmatpush1.xpose.msra.mxu0 0.0
        %1294 = vmatprep.subr.mxu0 0.0
        %1295 = vmatpush1.xpose.msra.mxu0 0.0
        %1296 = vmatprep.subr.mxu0 0.0
        %1297 = vmatpush1.xpose.msra.mxu0 0.0
        %1298 = vmatprep.subr.mxu0 0.0
        %1299 = vmatpush1.xpose.msra.mxu0 0.0
        %1300 = vmatprep.subr.mxu0 0.0
        %1301 = vmatpush1.xpose.msra.mxu0 0.0
        %1302 = vmatprep.subr.mxu0 0.0
        %1303 = vmatpush1.xpose.msra.mxu0 0.0
        %1304 = vmatprep.subr.mxu0 0.0
        %1305 = vmatpush1.xpose.msra.mxu0 0.0
        %1306 = vmatprep.mubr.f32.mxu0 0.0
        %1307 = vmatmul.mubr.f32.gmra.mrb[0].mxu0 %v1226
        %v1308 = vpop.f32.mrb[0].mxu0
        %v1309 = vadd.f32 0.0, %v1308
        %v1310 = vpop.f32.mrb[0].mxu0
        %1311 = vmatprep.mubr.f32.mxu0 0.0
        %1312 = vmatmul.mubr.f32.gmra.mrb[0].mxu0 %v1227
        %v1313 = vpop.f32.mrb[0].mxu0
        %v1314 = vadd.f32 0.0, %v1313
        %v1315 = vpop.f32.mrb[0].mxu0
        %1316 = vmatprep.mubr.f32.mxu0 0.0
        %1317 = vmatmul.mubr.f32.gmra.mrb[0].mxu0 %v1228
        %v1318 = vpop.f32.mrb[0].mxu0
        %v1319 = vadd.f32 0.0, %v1318
        %v1320 = vpop.f32.mrb[0].mxu0
        %1321 = vmatprep.mubr.f32.mxu0 0.0
        %1322 = vmatmul.mubr.f32.gmra.mrb[0].mxu0 %v1229
        %v1323 = vpop.f32.mrb[0].mxu0
        %v1324 = vadd.f32 0.0, %v1323
        %v1325 = vpop.f32.mrb[0].mxu0
        %1326 = vmatprep.mubr.f32.mxu0 0.0
        %1327 = vmatmul.mubr.f32.gmra.mrb[0].mxu0 %v1230
        %v1328 = vpop.f32.mrb[0].mxu0
        %v1329 = vadd.f32 0.0, %v1328
        %v1330 = vpop.f32.mrb[0].mxu0
        %1331 = vmatprep.mubr.f32.mxu0 0.0
        %1332 = vmatmul.mubr.f32.gmra.mrb[0].mxu0 %v1231
        %v1333 = vpop.f32.mrb[0].mxu0
        %v1334 = vadd.f32 0.0, %v1333
        %v1335 = vpop.f32.mrb[0].mxu0
        %1336 = vmatprep.mubr.f32.mxu0 0.0
        %1337 = vmatmul.mubr.f32.gmra.mrb[0].mxu0 %v1232
        %v1338 = vpop.f32.mrb[0].mxu0
        %v1339 = vadd.f32 0.0, %v1338
        %v1340 = vpop.f32.mrb[0].mxu0
        %1341 = vmatprep.mubr.f32.mxu0 0.0
        %1342 = vmatmul.mubr.f32.gmra.mrb[0].mxu0 %v1233
        %v1343 = vpop.f32.mrb[0].mxu0
        %v1344 = vadd.f32 0.0, %v1343
        %v1345 = vpop.f32.mrb[0].mxu0
        %1346 = vmatprep.mubr.f32.mxu0 0.0
        %1347 = vmatmul.mubr.f32.gmra.mrb[0].mxu0 %v1234
        %v1348 = vpop.f32.mrb[0].mxu0
        %v1349 = vadd.f32 0.0, %v1348
        %v1350 = vpop.f32.mrb[0].mxu0
        %1351 = vmatprep.mubr.f32.mxu0 0.0
        %1352 = vmatmul.mubr.f32.gmra.mrb[0].mxu0 %v1235
        %v1353 = vpop.f32.mrb[0].mxu0
        %v1354 = vadd.f32 0.0, %v1353
        %v1355 = vpop.f32.mrb[0].mxu0
        %1356 = vmatprep.mubr.f32.mxu0 0.0
        %1357 = vmatmul.mubr.f32.gmra.mrb[0].mxu0 %v1236
        %v1358 = vpop.f32.mrb[0].mxu0
        %v1359 = vadd.f32 0.0, %v1358
        %v1360 = vpop.f32.mrb[0].mxu0
        %1361 = vmatprep.mubr.f32.mxu0 0.0
        %1362 = vmatmul.mubr.f32.gmra.mrb[0].mxu0 %v1237
        %v1363 = vpop.f32.mrb[0].mxu0
        %v1364 = vadd.f32 0.0, %v1363
        %v1365 = vpop.f32.mrb[0].mxu0
        %1366 = vmatprep.mubr.f32.mxu0 0.0
        %1367 = vmatmul.mubr.f32.gmra.mrb[0].mxu0 %v1238
        %v1368 = vpop.f32.mrb[0].mxu0
        %v1369 = vadd.f32 0.0, %v1368
        %v1370 = vpop.f32.mrb[0].mxu0
        %1371 = vmatprep.mubr.f32.mxu0 0.0
        %1372 = vmatmul.mubr.f32.gmra.mrb[0].mxu0 %v1239
        %v1373 = vpop.f32.mrb[0].mxu0
        %v1374 = vadd.f32 0.0, %v1373
        %v1375 = vpop.f32.mrb[0].mxu0
        %1376 = vmatprep.mubr.f32.mxu0 0.0
        %1377 = vmatmul.mubr.f32.gmra.mrb[0].mxu0 %v1240
        %v1378 = vpop.f32.mrb[0].mxu0
        %v1379 = vadd.f32 0.0, %v1378
        %v1380 = vpop.f32.mrb[0].mxu0
        %1381 = vmatprep.mubr.f32.mxu0 0.0
        %1382 = vmatmul.mubr.f32.gmra.mrb[0].mxu0 %v1241
        %v1383 = vpop.f32.mrb[0].mxu0
        %v1384 = vadd.f32 0.0, %v1383
        %v1385 = vpop.f32.mrb[0].mxu0
        %1386 = vdwg.mxu0
        %1387 = vmatprep.subr.mxu0 0.0
        %1388 = vmatpush1.msra.mxu0 %v1309
        %1389 = vmatprep.subr.mxu0 0.0
        %1390 = vmatpush1.msra.mxu0 %v1314
        %1391 = vmatprep.subr.mxu0 0.0
        %1392 = vmatpush1.msra.mxu0 %v1319
        %1393 = vmatprep.subr.mxu0 0.0
        %1394 = vmatpush1.msra.mxu0 %v1324
        %1395 = vmatprep.subr.mxu0 0.0
        %1396 = vmatpush1.msra.mxu0 %v1329
        %1397 = vmatprep.subr.mxu0 0.0
        %1398 = vmatpush1.msra.mxu0 %v1334
        %1399 = vmatprep.subr.mxu0 0.0
        %1400 = vmatpush1.msra.mxu0 %v1339
        %1401 = vmatprep.subr.mxu0 0.0
        %1402 = vmatpush1.msra.mxu0 %v1344
        %1403 = vmatprep.subr.mxu0 0.0
        %1404 = vmatpush1.msra.mxu0 %v1349
        %1405 = vmatprep.subr.mxu0 0.0
        %1406 = vmatpush1.msra.mxu0 %v1354
        %1407 = vmatprep.subr.mxu0 0.0
        %1408 = vmatpush1.msra.mxu0 %v1359
        %1409 = vmatprep.subr.mxu0 0.0
        %1410 = vmatpush1.msra.mxu0 %v1364
        %1411 = vmatprep.subr.mxu0 0.0
        %1412 = vmatpush1.msra.mxu0 %v1369
        %1413 = vmatprep.subr.mxu0 0.0
        %1414 = vmatpush1.msra.mxu0 %v1374
        %1415 = vmatprep.subr.mxu0 0.0
        %1416 = vmatpush1.msra.mxu0 %v1379
        %1417 = vmatprep.subr.mxu0 0.0
        %1418 = vmatpush1.msra.mxu0 %v1384
        %1419 = vmatprep.subr.mxu0 0.0
        %1420 = vmatpush1.msra.mxu0 0.0
        %1421 = vmatprep.subr.mxu0 0.0
        %1422 = vmatpush1.msra.mxu0 0.0
        %1423 = vmatprep.subr.mxu0 0.0
        %1424 = vmatpush1.msra.mxu0 0.0
        %1425 = vmatprep.subr.mxu0 0.0
        %1426 = vmatpush1.msra.mxu0 0.0
        %1427 = vmatprep.subr.mxu0 0.0
        %1428 = vmatpush1.msra.mxu0 0.0
        %1429 = vmatprep.subr.mxu0 0.0
        %1430 = vmatpush1.msra.mxu0 0.0
        %1431 = vmatprep.subr.mxu0 0.0
        %1432 = vmatpush1.msra.mxu0 0.0
        %1433 = vmatprep.subr.mxu0 0.0
        %1434 = vmatpush1.msra.mxu0 0.0
        %1435 = vmatprep.subr.mxu0 0.0
        %1436 = vmatpush1.msra.mxu0 0.0
        %1437 = vmatprep.subr.mxu0 0.0
        %1438 = vmatpush1.msra.mxu0 0.0
        %1439 = vmatprep.subr.mxu0 0.0
        %1440 = vmatpush1.msra.mxu0 0.0
        %1441 = vmatprep.subr.mxu0 0.0
        %1442 = vmatpush1.msra.mxu0 0.0
        %1443 = vmatprep.subr.mxu0 0.0
        %1444 = vmatpush1.msra.mxu0 0.0
        %1445 = vmatprep.subr.mxu0 0.0
        %1446 = vmatpush1.msra.mxu0 0.0
        %1447 = vmatprep.subr.mxu0 0.0
        %1448 = vmatpush1.msra.mxu0 0.0
        %1449 = vmatprep.subr.mxu0 0.0
        %1450 = vmatpush1.msra.mxu0 0.0
        %1451 = vmatprep.mubr.f32.mxu0 0.0
        %1452 = vmatmul.mubr.f32.gmra.mrb[0].mxu0 %v1064
        %v1453 = vpop.f32.mrb[0].mxu0
        %v1454 = vadd.f32 0.0, %v1453
        %v1455 = vpop.f32.mrb[0].mxu0
        %1456 = vdwg.mxu0
        %1457 = vxpose.xlu0.b32.start [1/16] %v1454, 128
        %1458 = vxpose.xlu0.b32.cont [2/16] 0.0, 128
        %1459 = vxpose.xlu0.b32.cont [3/16] 0.0, 128
        %1460 = vxpose.xlu0.b32.cont [4/16] 0.0, 128
        %1461 = vxpose.xlu0.b32.cont [5/16] 0.0, 128
        %1462 = vxpose.xlu0.b32.cont [6/16] 0.0, 128
        %1463 = vxpose.xlu0.b32.cont [7/16] 0.0, 128
        %1464 = vxpose.xlu0.b32.cont [8/16] 0.0, 128
        %1465 = vxpose.xlu0.b32.cont [9/16] 0.0, 128
        %1466 = vxpose.xlu0.b32.cont [10/16] 0.0, 128
        %1467 = vxpose.xlu0.b32.cont [11/16] 0.0, 128
        %1468 = vxpose.xlu0.b32.cont [12/16] 0.0, 128
        %1469 = vxpose.xlu0.b32.cont [13/16] 0.0, 128
        %1470 = vxpose.xlu0.b32.cont [14/16] 0.0, 128
        %1471 = vxpose.xlu0.b32.cont [15/16] 0.0, 128
        %1472 = vxpose.xlu0.b32.end [16/16] 0.0, 128
        %v1473 = vpop.trf.xlu0
        %v1474 = vpop.trf.xlu0
        %v1475 = vpop.trf.xlu0
        %v1476 = vpop.trf.xlu0
        %v1477 = vpop.trf.xlu0
        %v1478 = vpop.trf.xlu0
        %v1479 = vpop.trf.xlu0
        %v1480 = vpop.trf.xlu0
        %v1481 = vpop.trf.xlu0
        %v1482 = vpop.trf.xlu0
        %v1483 = vpop.trf.xlu0
        %v1484 = vpop.trf.xlu0
        %v1485 = vpop.trf.xlu0
        %v1486 = vpop.trf.xlu0
        %v1487 = vpop.trf.xlu0
        %v1488 = vpop.trf.xlu0
        %vm1489 = vcmask 31744
        %v1491 = vsel %vm1489, %v1473, 0
        %vm1493 = vcmask 1043456
        %v1495 = vsel %vm1493, %v1064, 0
        %1497 = vmatprep.subr.mxu0 0.0
        %1498 = vmatpush1.msra.mxu0 %v1495
        %1499 = vmatprep.subr.mxu0 0.0
        %1500 = vmatpush1.msra.mxu0 0.0
        %1501 = vmatprep.subr.mxu0 0.0
        %1502 = vmatpush1.msra.mxu0 0.0
        %1503 = vmatprep.subr.mxu0 0.0
        %1504 = vmatpush1.msra.mxu0 0.0
        %1505 = vmatprep.subr.mxu0 0.0
        %1506 = vmatpush1.msra.mxu0 0.0
        %1507 = vmatprep.subr.mxu0 0.0
        %1508 = vmatpush1.msra.mxu0 0.0
        %1509 = vmatprep.subr.mxu0 0.0
        %1510 = vmatpush1.msra.mxu0 0.0
        %1511 = vmatprep.subr.mxu0 0.0
        %1512 = vmatpush1.msra.mxu0 0.0
        %1513 = vmatprep.subr.mxu0 0.0
        %1514 = vmatpush1.msra.mxu0 0.0
        %1515 = vmatprep.subr.mxu0 0.0
        %1516 = vmatpush1.msra.mxu0 0.0
        %1517 = vmatprep.subr.mxu0 0.0
        %1518 = vmatpush1.msra.mxu0 0.0
        %1519 = vmatprep.subr.mxu0 0.0
        %1520 = vmatpush1.msra.mxu0 0.0
        %1521 = vmatprep.subr.mxu0 0.0
        %1522 = vmatpush1.msra.mxu0 0.0
        %1523 = vmatprep.subr.mxu0 0.0
        %1524 = vmatpush1.msra.mxu0 0.0
        %1525 = vmatprep.subr.mxu0 0.0
        %1526 = vmatpush1.msra.mxu0 0.0
        %1527 = vmatprep.subr.mxu0 0.0
        %1528 = vmatpush1.msra.mxu0 0.0
        %1529 = vmatprep.subr.mxu0 0.0
        %1530 = vmatpush1.msra.mxu0 0.0
        %1531 = vmatprep.subr.mxu0 0.0
        %1532 = vmatpush1.msra.mxu0 0.0
        %1533 = vmatprep.subr.mxu0 0.0
        %1534 = vmatpush1.msra.mxu0 0.0
        %1535 = vmatprep.subr.mxu0 0.0
        %1536 = vmatpush1.msra.mxu0 0.0
        %1537 = vmatprep.subr.mxu0 0.0
        %1538 = vmatpush1.msra.mxu0 0.0
        %1539 = vmatprep.subr.mxu0 0.0
        %1540 = vmatpush1.msra.mxu0 0.0
        %1541 = vmatprep.subr.mxu0 0.0
        %1542 = vmatpush1.msra.mxu0 0.0
        %1543 = vmatprep.subr.mxu0 0.0
        %1544 = vmatpush1.msra.mxu0 0.0
        %1545 = vmatprep.subr.mxu0 0.0
        %1546 = vmatpush1.msra.mxu0 0.0
        %1547 = vmatprep.subr.mxu0 0.0
        %1548 = vmatpush1.msra.mxu0 0.0
        %1549 = vmatprep.subr.mxu0 0.0
        %1550 = vmatpush1.msra.mxu0 0.0
        %1551 = vmatprep.subr.mxu0 0.0
        %1552 = vmatpush1.msra.mxu0 0.0
        %1553 = vmatprep.subr.mxu0 0.0
        %1554 = vmatpush1.msra.mxu0 0.0
        %1555 = vmatprep.subr.mxu0 0.0
        %1556 = vmatpush1.msra.mxu0 0.0
        %1557 = vmatprep.subr.mxu0 0.0
        %1558 = vmatpush1.msra.mxu0 0.0
        %1559 = vmatprep.subr.mxu0 0.0
        %1560 = vmatpush1.msra.mxu0 0.0
        %1561 = vmatprep.mubr.f32.mxu0 0.0
        %1562 = vmatmul.mubr.f32.gmra.mrb[0].mxu0 %v1491
        %v1563 = vpop.f32.mrb[0].mxu0
        %v1564 = vadd.f32 0.0, %v1563
        %v1565 = vpop.f32.mrb[0].mxu0
        %1566 = vdwg.mxu0
        %1567 = vxpose.xlu0.b32.start [1/16] %v1064, 128
        %1568 = vxpose.xlu0.b32.cont [2/16] 0.0, 128
        %1569 = vxpose.xlu0.b32.cont [3/16] 0.0, 128
        %1570 = vxpose.xlu0.b32.cont [4/16] 0.0, 128
        %1571 = vxpose.xlu0.b32.cont [5/16] 0.0, 128
        %1572 = vxpose.xlu0.b32.cont [6/16] 0.0, 128
        %1573 = vxpose.xlu0.b32.cont [7/16] 0.0, 128
        %1574 = vxpose.xlu0.b32.cont [8/16] 0.0, 128
        %1575 = vxpose.xlu0.b32.cont [9/16] 0.0, 128
        %1576 = vxpose.xlu0.b32.cont [10/16] 0.0, 128
        %1577 = vxpose.xlu0.b32.cont [11/16] 0.0, 128
        %1578 = vxpose.xlu0.b32.cont [12/16] 0.0, 128
        %1579 = vxpose.xlu0.b32.cont [13/16] 0.0, 128
        %1580 = vxpose.xlu0.b32.cont [14/16] 0.0, 128
        %1581 = vxpose.xlu0.b32.cont [15/16] 0.0, 128
        %1582 = vxpose.xlu0.b32.end [16/16] 0.0, 128
        %v1583 = vpop.trf.xlu0
        %v1584 = vpop.trf.xlu0
        %v1585 = vpop.trf.xlu0
        %v1586 = vpop.trf.xlu0
        %v1587 = vpop.trf.xlu0
        %v1588 = vpop.trf.xlu0
        %v1589 = vpop.trf.xlu0
        %v1590 = vpop.trf.xlu0
        %v1591 = vpop.trf.xlu0
        %v1592 = vpop.trf.xlu0
        %v1593 = vpop.trf.xlu0
        %v1594 = vpop.trf.xlu0
        %v1595 = vpop.trf.xlu0
        %v1596 = vpop.trf.xlu0
        %v1597 = vpop.trf.xlu0
        %v1598 = vpop.trf.xlu0
        %v1600 = vsel %vm1489, %v1583, 0
        %v1603 = vsel %vm1489, %v1584, 0
        %v1606 = vsel %vm1489, %v1585, 0
        %v1609 = vsel %vm1489, %v1586, 0
        %v1612 = vsel %vm1489, %v1587, 0
        %v1615 = vsel %vm1489, %v1588, 0
        %v1618 = vsel %vm1489, %v1589, 0
        %v1621 = vsel %vm1489, %v1590, 0
        %v1624 = vsel %vm1489, %v1591, 0
        %v1627 = vsel %vm1489, %v1592, 0
        %v1630 = vsel %vm1489, %v1593, 0
        %v1633 = vsel %vm1489, %v1594, 0
        %v1636 = vsel %vm1489, %v1595, 0
        %v1639 = vsel %vm1489, %v1596, 0
        %v1642 = vsel %vm1489, %v1597, 0
        %v1645 = vsel %vm1489, %v1598, 0
        %v1648 = vsel %vm1493, %v1564, 0
        %1650 = vmatprep.subr.mxu0 0.0
        %1651 = vmatpush1.msra.mxu0 %v1648
        %1652 = vmatprep.subr.mxu0 0.0
        %1653 = vmatpush1.msra.mxu0 0.0
        %1654 = vmatprep.subr.mxu0 0.0
        %1655 = vmatpush1.msra.mxu0 0.0
        %1656 = vmatprep.subr.mxu0 0.0
        %1657 = vmatpush1.msra.mxu0 0.0
        %1658 = vmatprep.subr.mxu0 0.0
        %1659 = vmatpush1.msra.mxu0 0.0
        %1660 = vmatprep.subr.mxu0 0.0
        %1661 = vmatpush1.msra.mxu0 0.0
        %1662 = vmatprep.subr.mxu0 0.0
        %1663 = vmatpush1.msra.mxu0 0.0
        %1664 = vmatprep.subr.mxu0 0.0
        %1665 = vmatpush1.msra.mxu0 0.0
        %1666 = vmatprep.subr.mxu0 0.0
        %1667 = vmatpush1.msra.mxu0 0.0
        %1668 = vmatprep.subr.mxu0 0.0
        %1669 = vmatpush1.msra.mxu0 0.0
        %1670 = vmatprep.subr.mxu0 0.0
        %1671 = vmatpush1.msra.mxu0 0.0
        %1672 = vmatprep.subr.mxu0 0.0
        %1673 = vmatpush1.msra.mxu0 0.0
        %1674 = vmatprep.subr.mxu0 0.0
        %1675 = vmatpush1.msra.mxu0 0.0
        %1676 = vmatprep.subr.mxu0 0.0
        %1677 = vmatpush1.msra.mxu0 0.0
        %1678 = vmatprep.subr.mxu0 0.0
        %1679 = vmatpush1.msra.mxu0 0.0
        %1680 = vmatprep.subr.mxu0 0.0
        %1681 = vmatpush1.msra.mxu0 0.0
        %1682 = vmatprep.subr.mxu0 0.0
        %1683 = vmatpush1.msra.mxu0 0.0
        %1684 = vmatprep.subr.mxu0 0.0
        %1685 = vmatpush1.msra.mxu0 0.0
        %1686 = vmatprep.subr.mxu0 0.0
        %1687 = vmatpush1.msra.mxu0 0.0
        %1688 = vmatprep.subr.mxu0 0.0
        %1689 = vmatpush1.msra.mxu0 0.0
        %1690 = vmatprep.subr.mxu0 0.0
        %1691 = vmatpush1.msra.mxu0 0.0
        %1692 = vmatprep.subr.mxu0 0.0
        %1693 = vmatpush1.msra.mxu0 0.0
        %1694 = vmatprep.subr.mxu0 0.0
        %1695 = vmatpush1.msra.mxu0 0.0
        %1696 = vmatprep.subr.mxu0 0.0
        %1697 = vmatpush1.msra.mxu0 0.0
        %1698 = vmatprep.subr.mxu0 0.0
        %1699 = vmatpush1.msra.mxu0 0.0
        %1700 = vmatprep.subr.mxu0 0.0
        %1701 = vmatpush1.msra.mxu0 0.0
        %1702 = vmatprep.subr.mxu0 0.0
        %1703 = vmatpush1.msra.mxu0 0.0
        %1704 = vmatprep.subr.mxu0 0.0
        %1705 = vmatpush1.msra.mxu0 0.0
        %1706 = vmatprep.subr.mxu0 0.0
        %1707 = vmatpush1.msra.mxu0 0.0
        %1708 = vmatprep.subr.mxu0 0.0
        %1709 = vmatpush1.msra.mxu0 0.0
        %1710 = vmatprep.subr.mxu0 0.0
        %1711 = vmatpush1.msra.mxu0 0.0
        %1712 = vmatprep.subr.mxu0 0.0
        %1713 = vmatpush1.msra.mxu0 0.0
        %1714 = vmatprep.mubr.f32.mxu0 0.0
        %1715 = vmatmul.mubr.f32.gmra.mrb[0].mxu0 %v1600
        %v1716 = vpop.f32.mrb[0].mxu0
        %v1717 = vadd.f32 0.0, %v1716
        %v1718 = vpop.f32.mrb[0].mxu0
        %1719 = vmatprep.mubr.f32.mxu0 0.0
        %1720 = vmatmul.mubr.f32.gmra.mrb[0].mxu0 %v1603
        %v1721 = vpop.f32.mrb[0].mxu0
        %v1722 = vadd.f32 0.0, %v1721
        %v1723 = vpop.f32.mrb[0].mxu0
        %1724 = vmatprep.mubr.f32.mxu0 0.0
        %1725 = vmatmul.mubr.f32.gmra.mrb[0].mxu0 %v1606
        %v1726 = vpop.f32.mrb[0].mxu0
        %v1727 = vadd.f32 0.0, %v1726
        %v1728 = vpop.f32.mrb[0].mxu0
        %1729 = vmatprep.mubr.f32.mxu0 0.0
        %1730 = vmatmul.mubr.f32.gmra.mrb[0].mxu0 %v1609
        %v1731 = vpop.f32.mrb[0].mxu0
        %v1732 = vadd.f32 0.0, %v1731
        %v1733 = vpop.f32.mrb[0].mxu0
        %1734 = vmatprep.mubr.f32.mxu0 0.0
        %1735 = vmatmul.mubr.f32.gmra.mrb[0].mxu0 %v1612
        %v1736 = vpop.f32.mrb[0].mxu0
        %v1737 = vadd.f32 0.0, %v1736
        %v1738 = vpop.f32.mrb[0].mxu0
        %1739 = vmatprep.mubr.f32.mxu0 0.0
        %1740 = vmatmul.mubr.f32.gmra.mrb[0].mxu0 %v1615
        %v1741 = vpop.f32.mrb[0].mxu0
        %v1742 = vadd.f32 0.0, %v1741
        %v1743 = vpop.f32.mrb[0].mxu0
        %1744 = vmatprep.mubr.f32.mxu0 0.0
        %1745 = vmatmul.mubr.f32.gmra.mrb[0].mxu0 %v1618
        %v1746 = vpop.f32.mrb[0].mxu0
        %v1747 = vadd.f32 0.0, %v1746
        %v1748 = vpop.f32.mrb[0].mxu0
        %1749 = vmatprep.mubr.f32.mxu0 0.0
        %1750 = vmatmul.mubr.f32.gmra.mrb[0].mxu0 %v1621
        %v1751 = vpop.f32.mrb[0].mxu0
        %v1752 = vadd.f32 0.0, %v1751
        %v1753 = vpop.f32.mrb[0].mxu0
        %1754 = vmatprep.mubr.f32.mxu0 0.0
        %1755 = vmatmul.mubr.f32.gmra.mrb[0].mxu0 %v1624
        %v1756 = vpop.f32.mrb[0].mxu0
        %v1757 = vadd.f32 0.0, %v1756
        %v1758 = vpop.f32.mrb[0].mxu0
        %1759 = vmatprep.mubr.f32.mxu0 0.0
        %1760 = vmatmul.mubr.f32.gmra.mrb[0].mxu0 %v1627
        %v1761 = vpop.f32.mrb[0].mxu0
        %v1762 = vadd.f32 0.0, %v1761
        %v1763 = vpop.f32.mrb[0].mxu0
        %1764 = vmatprep.mubr.f32.mxu0 0.0
        %1765 = vmatmul.mubr.f32.gmra.mrb[0].mxu0 %v1630
        %v1766 = vpop.f32.mrb[0].mxu0
        %v1767 = vadd.f32 0.0, %v1766
        %v1768 = vpop.f32.mrb[0].mxu0
        %1769 = vmatprep.mubr.f32.mxu0 0.0
        %1770 = vmatmul.mubr.f32.gmra.mrb[0].mxu0 %v1633
        %v1771 = vpop.f32.mrb[0].mxu0
        %v1772 = vadd.f32 0.0, %v1771
        %v1773 = vpop.f32.mrb[0].mxu0
        %1774 = vmatprep.mubr.f32.mxu0 0.0
        %1775 = vmatmul.mubr.f32.gmra.mrb[0].mxu0 %v1636
        %v1776 = vpop.f32.mrb[0].mxu0
        %v1777 = vadd.f32 0.0, %v1776
        %v1778 = vpop.f32.mrb[0].mxu0
        %1779 = vmatprep.mubr.f32.mxu0 0.0
        %1780 = vmatmul.mubr.f32.gmra.mrb[0].mxu0 %v1639
        %v1781 = vpop.f32.mrb[0].mxu0
        %v1782 = vadd.f32 0.0, %v1781
        %v1783 = vpop.f32.mrb[0].mxu0
        %1784 = vmatprep.mubr.f32.mxu0 0.0
        %1785 = vmatmul.mubr.f32.gmra.mrb[0].mxu0 %v1642
        %v1786 = vpop.f32.mrb[0].mxu0
        %v1787 = vadd.f32 0.0, %v1786
        %v1788 = vpop.f32.mrb[0].mxu0
        %1789 = vmatprep.mubr.f32.mxu0 0.0
        %1790 = vmatmul.mubr.f32.gmra.mrb[0].mxu0 %v1645
        %v1791 = vpop.f32.mrb[0].mxu0
        %v1792 = vadd.f32 0.0, %v1791
        %v1793 = vpop.f32.mrb[0].mxu0
        %1794 = vdwg.mxu0
        %v1795 = vmul.f32 %v1717, %v1065
        %v1796 = vmul.f32 %v1722, %v1066
        %v1797 = vmul.f32 %v1727, %v1067
        %v1798 = vmul.f32 %v1732, %v1068
        %v1799 = vmul.f32 %v1737, %v1069
        %v1800 = vmul.f32 %v1742, %v1070
        %v1801 = vmul.f32 %v1747, %v1071
        %v1802 = vmul.f32 %v1752, %v1072
        %v1803 = vmul.f32 %v1757, %v1073
        %v1804 = vmul.f32 %v1762, %v1074
        %v1805 = vmul.f32 %v1767, %v1075
        %v1806 = vmul.f32 %v1772, %v1076
        %v1807 = vmul.f32 %v1777, %v1077
        %v1808 = vmul.f32 %v1782, %v1078
        %v1809 = vmul.f32 %v1787, %v1079
        %v1810 = vmul.f32 %v1792, %v1080
        %1811 = vmatprep.subr.mxu0 0.0
        %1812 = vmatpush1.msra.mxu0 %v844
        %1813 = vmatprep.subr.mxu0 0.0
        %1814 = vmatpush1.msra.mxu0 %v845
        %1815 = vmatprep.subr.mxu0 0.0
        %1816 = vmatpush1.msra.mxu0 %v846
        %1817 = vmatprep.subr.mxu0 0.0
        %1818 = vmatpush1.msra.mxu0 %v847
        %1819 = vmatprep.subr.mxu0 0.0
        %1820 = vmatpush1.msra.mxu0 %v848
        %1821 = vmatprep.subr.mxu0 0.0
        %1822 = vmatpush1.msra.mxu0 %v849
        %1823 = vmatprep.subr.mxu0 0.0
        %1824 = vmatpush1.msra.mxu0 %v850
        %1825 = vmatprep.subr.mxu0 0.0
        %1826 = vmatpush1.msra.mxu0 %v851
        %1827 = vmatprep.subr.mxu0 0.0
        %1828 = vmatpush1.msra.mxu0 %v852
        %1829 = vmatprep.subr.mxu0 0.0
        %1830 = vmatpush1.msra.mxu0 %v853
        %1831 = vmatprep.subr.mxu0 0.0
        %1832 = vmatpush1.msra.mxu0 %v854
        %1833 = vmatprep.subr.mxu0 0.0
        %1834 = vmatpush1.msra.mxu0 %v855
        %1835 = vmatprep.subr.mxu0 0.0
        %1836 = vmatpush1.msra.mxu0 %v856
        %1837 = vmatprep.subr.mxu0 0.0
        %1838 = vmatpush1.msra.mxu0 %v857
        %1839 = vmatprep.subr.mxu0 0.0
        %1840 = vmatpush1.msra.mxu0 %v858
        %1841 = vmatprep.subr.mxu0 0.0
        %1842 = vmatpush1.msra.mxu0 %v859
        %1843 = vmatprep.subr.mxu0 0.0
        %1844 = vmatpush1.msra.mxu0 0.0
        %1845 = vmatprep.subr.mxu0 0.0
        %1846 = vmatpush1.msra.mxu0 0.0
        %1847 = vmatprep.subr.mxu0 0.0
        %1848 = vmatpush1.msra.mxu0 0.0
        %1849 = vmatprep.subr.mxu0 0.0
        %1850 = vmatpush1.msra.mxu0 0.0
        %1851 = vmatprep.subr.mxu0 0.0
        %1852 = vmatpush1.msra.mxu0 0.0
        %1853 = vmatprep.subr.mxu0 0.0
        %1854 = vmatpush1.msra.mxu0 0.0
        %1855 = vmatprep.subr.mxu0 0.0
        %1856 = vmatpush1.msra.mxu0 0.0
        %1857 = vmatprep.subr.mxu0 0.0
        %1858 = vmatpush1.msra.mxu0 0.0
        %1859 = vmatprep.subr.mxu0 0.0
        %1860 = vmatpush1.msra.mxu0 0.0
        %1861 = vmatprep.subr.mxu0 0.0
        %1862 = vmatpush1.msra.mxu0 0.0
        %1863 = vmatprep.subr.mxu0 0.0
        %1864 = vmatpush1.msra.mxu0 0.0
        %1865 = vmatprep.subr.mxu0 0.0
        %1866 = vmatpush1.msra.mxu0 0.0
        %1867 = vmatprep.subr.mxu0 0.0
        %1868 = vmatpush1.msra.mxu0 0.0
        %1869 = vmatprep.subr.mxu0 0.0
        %1870 = vmatpush1.msra.mxu0 0.0
        %1871 = vmatprep.subr.mxu0 0.0
        %1872 = vmatpush1.msra.mxu0 0.0
        %1873 = vmatprep.subr.mxu0 0.0
        %1874 = vmatpush1.msra.mxu0 0.0
        %1875 = vmatprep.mubr.f32.mxu0 0.0
        %1876 = vmatmul.mubr.f32.gmra.mrb[0].mxu0 %v1795
        %v1877 = vpop.f32.mrb[0].mxu0
        %v1878 = vadd.f32 0.0, %v1877
        %v1879 = vpop.f32.mrb[0].mxu0
        %1880 = vmatprep.mubr.f32.mxu0 0.0
        %1881 = vmatmul.mubr.f32.gmra.mrb[0].mxu0 %v1796
        %v1882 = vpop.f32.mrb[0].mxu0
        %v1883 = vadd.f32 0.0, %v1882
        %v1884 = vpop.f32.mrb[0].mxu0
        %1885 = vmatprep.mubr.f32.mxu0 0.0
        %1886 = vmatmul.mubr.f32.gmra.mrb[0].mxu0 %v1797
        %v1887 = vpop.f32.mrb[0].mxu0
        %v1888 = vadd.f32 0.0, %v1887
        %v1889 = vpop.f32.mrb[0].mxu0
        %1890 = vmatprep.mubr.f32.mxu0 0.0
        %1891 = vmatmul.mubr.f32.gmra.mrb[0].mxu0 %v1798
        %v1892 = vpop.f32.mrb[0].mxu0
        %v1893 = vadd.f32 0.0, %v1892
        %v1894 = vpop.f32.mrb[0].mxu0
        %1895 = vmatprep.mubr.f32.mxu0 0.0
        %1896 = vmatmul.mubr.f32.gmra.mrb[0].mxu0 %v1799
        %v1897 = vpop.f32.mrb[0].mxu0
        %v1898 = vadd.f32 0.0, %v1897
        %v1899 = vpop.f32.mrb[0].mxu0
        %1900 = vmatprep.mubr.f32.mxu0 0.0
        %1901 = vmatmul.mubr.f32.gmra.mrb[0].mxu0 %v1800
        %v1902 = vpop.f32.mrb[0].mxu0
        %v1903 = vadd.f32 0.0, %v1902
        %v1904 = vpop.f32.mrb[0].mxu0
        %1905 = vmatprep.mubr.f32.mxu0 0.0
        %1906 = vmatmul.mubr.f32.gmra.mrb[0].mxu0 %v1801
        %v1907 = vpop.f32.mrb[0].mxu0
        %v1908 = vadd.f32 0.0, %v1907
        %v1909 = vpop.f32.mrb[0].mxu0
        %1910 = vmatprep.mubr.f32.mxu0 0.0
        %1911 = vmatmul.mubr.f32.gmra.mrb[0].mxu0 %v1802
        %v1912 = vpop.f32.mrb[0].mxu0
        %v1913 = vadd.f32 0.0, %v1912
        %v1914 = vpop.f32.mrb[0].mxu0
        %1915 = vmatprep.mubr.f32.mxu0 0.0
        %1916 = vmatmul.mubr.f32.gmra.mrb[0].mxu0 %v1803
        %v1917 = vpop.f32.mrb[0].mxu0
        %v1918 = vadd.f32 0.0, %v1917
        %v1919 = vpop.f32.mrb[0].mxu0
        %1920 = vmatprep.mubr.f32.mxu0 0.0
        %1921 = vmatmul.mubr.f32.gmra.mrb[0].mxu0 %v1804
        %v1922 = vpop.f32.mrb[0].mxu0
        %v1923 = vadd.f32 0.0, %v1922
        %v1924 = vpop.f32.mrb[0].mxu0
        %1925 = vmatprep.mubr.f32.mxu0 0.0
        %1926 = vmatmul.mubr.f32.gmra.mrb[0].mxu0 %v1805
        %v1927 = vpop.f32.mrb[0].mxu0
        %v1928 = vadd.f32 0.0, %v1927
        %v1929 = vpop.f32.mrb[0].mxu0
        %1930 = vmatprep.mubr.f32.mxu0 0.0
        %1931 = vmatmul.mubr.f32.gmra.mrb[0].mxu0 %v1806
        %v1932 = vpop.f32.mrb[0].mxu0
        %v1933 = vadd.f32 0.0, %v1932
        %v1934 = vpop.f32.mrb[0].mxu0
        %1935 = vmatprep.mubr.f32.mxu0 0.0
        %1936 = vmatmul.mubr.f32.gmra.mrb[0].mxu0 %v1807
        %v1937 = vpop.f32.mrb[0].mxu0
        %v1938 = vadd.f32 0.0, %v1937
        %v1939 = vpop.f32.mrb[0].mxu0
        %1940 = vmatprep.mubr.f32.mxu0 0.0
        %1941 = vmatmul.mubr.f32.gmra.mrb[0].mxu0 %v1808
        %v1942 = vpop.f32.mrb[0].mxu0
        %v1943 = vadd.f32 0.0, %v1942
        %v1944 = vpop.f32.mrb[0].mxu0
        %1945 = vmatprep.mubr.f32.mxu0 0.0
        %1946 = vmatmul.mubr.f32.gmra.mrb[0].mxu0 %v1809
        %v1947 = vpop.f32.mrb[0].mxu0
        %v1948 = vadd.f32 0.0, %v1947
        %v1949 = vpop.f32.mrb[0].mxu0
        %1950 = vmatprep.mubr.f32.mxu0 0.0
        %1951 = vmatmul.mubr.f32.gmra.mrb[0].mxu0 %v1810
        %v1952 = vpop.f32.mrb[0].mxu0
        %v1953 = vadd.f32 0.0, %v1952
        %v1954 = vpop.f32.mrb[0].mxu0
        %1955 = vdwg.mxu0
        %v1956 = vld [vmem:[%s3] sm:$0xff]
        %v1957 = vld [vmem:[%s3 + $0x8] sm:$0xff]
        %v1958 = vld [vmem:[%s3 + $0x10] sm:$0xff]
        %v1959 = vld [vmem:[%s3 + $0x18] sm:$0xff]
        %v1960 = vld [vmem:[%s2] sm:$0xff]
        %v1961 = vld [vmem:[%s2 + $0x8] sm:$0xff]
        %v1962 = vld [vmem:[%s2 + $0x10] sm:$0xff]
        %v1963 = vld [vmem:[%s2 + $0x18] sm:$0xff]
        %1965 = vset.pattern.permute.xlu0 0
        %1966 = vperm.xlu0 %1965, %v1956
        %v1967 = vpop.permute.xlu0 %1966
        %1970 = vset.pattern.permute.xlu0 0
        %1971 = vperm.xlu0 %1970, %v1957
        %v1972 = vpop.permute.xlu0 %1971
        %1975 = vset.pattern.permute.xlu0 0
        %1976 = vperm.xlu0 %1975, %v1958
        %v1977 = vpop.permute.xlu0 %1976
        %1980 = vset.pattern.permute.xlu0 0
        %1981 = vperm.xlu0 %1980, %v1959
        %v1982 = vpop.permute.xlu0 %1981
        %1984 = vmatprep.subr.mxu0 0.0
        %1985 = vmatpush1.msra.mxu0 %v1878
        %1986 = vmatprep.subr.mxu0 0.0
        %1987 = vmatpush1.msra.mxu0 %v1883
        %1988 = vmatprep.subr.mxu0 0.0
        %1989 = vmatpush1.msra.mxu0 %v1888
        %1990 = vmatprep.subr.mxu0 0.0
        %1991 = vmatpush1.msra.mxu0 %v1893
        %1992 = vmatprep.subr.mxu0 0.0
        %1993 = vmatpush1.msra.mxu0 %v1898
        %1994 = vmatprep.subr.mxu0 0.0
        %1995 = vmatpush1.msra.mxu0 %v1903
        %1996 = vmatprep.subr.mxu0 0.0
        %1997 = vmatpush1.msra.mxu0 %v1908
        %1998 = vmatprep.subr.mxu0 0.0
        %1999 = vmatpush1.msra.mxu0 %v1913
        %2000 = vmatprep.subr.mxu0 0.0
        %2001 = vmatpush1.msra.mxu0 %v1918
        %2002 = vmatprep.subr.mxu0 0.0
        %2003 = vmatpush1.msra.mxu0 %v1923
        %2004 = vmatprep.subr.mxu0 0.0
        %2005 = vmatpush1.msra.mxu0 %v1928
        %2006 = vmatprep.subr.mxu0 0.0
        %2007 = vmatpush1.msra.mxu0 %v1933
        %2008 = vmatprep.subr.mxu0 0.0
        %2009 = vmatpush1.msra.mxu0 %v1938
        %2010 = vmatprep.subr.mxu0 0.0
        %2011 = vmatpush1.msra.mxu0 %v1943
        %2012 = vmatprep.subr.mxu0 0.0
        %2013 = vmatpush1.msra.mxu0 %v1948
        %2014 = vmatprep.subr.mxu0 0.0
        %2015 = vmatpush1.msra.mxu0 %v1953
        %2016 = vmatprep.subr.mxu0 0.0
        %2017 = vmatpush1.msra.mxu0 0.0
        %2018 = vmatprep.subr.mxu0 0.0
        %2019 = vmatpush1.msra.mxu0 0.0
        %2020 = vmatprep.subr.mxu0 0.0
        %2021 = vmatpush1.msra.mxu0 0.0
        %2022 = vmatprep.subr.mxu0 0.0
        %2023 = vmatpush1.msra.mxu0 0.0
        %2024 = vmatprep.subr.mxu0 0.0
        %2025 = vmatpush1.msra.mxu0 0.0
        %2026 = vmatprep.subr.mxu0 0.0
        %2027 = vmatpush1.msra.mxu0 0.0
        %2028 = vmatprep.subr.mxu0 0.0
        %2029 = vmatpush1.msra.mxu0 0.0
        %2030 = vmatprep.subr.mxu0 0.0
        %2031 = vmatpush1.msra.mxu0 0.0
        %2032 = vmatprep.subr.mxu0 0.0
        %2033 = vmatpush1.msra.mxu0 0.0
        %2034 = vmatprep.subr.mxu0 0.0
        %2035 = vmatpush1.msra.mxu0 0.0
        %2036 = vmatprep.subr.mxu0 0.0
        %2037 = vmatpush1.msra.mxu0 0.0
        %2038 = vmatprep.subr.mxu0 0.0
        %2039 = vmatpush1.msra.mxu0 0.0
        %2040 = vmatprep.subr.mxu0 0.0
        %2041 = vmatpush1.msra.mxu0 0.0
        %2042 = vmatprep.subr.mxu0 0.0
        %2043 = vmatpush1.msra.mxu0 0.0
        %2044 = vmatprep.subr.mxu0 0.0
        %2045 = vmatpush1.msra.mxu0 0.0
        %2046 = vmatprep.subr.mxu0 0.0
        %2047 = vmatpush1.msra.mxu0 0.0
        %2048 = vmatprep.mubr.f32.mxu0 0.0
        %2049 = vmatmul.mubr.f32.gmra.mrb[0].mxu0 %v1960
        %v2050 = vpop.f32.mrb[0].mxu0
        %v2051 = vadd.f32 %v1967, %v2050
        %v2052 = vpop.f32.mrb[0].mxu0
        %2053 = vmatprep.mubr.f32.mxu0 0.0
        %2054 = vmatmul.mubr.f32.gmra.mrb[0].mxu0 %v1961
        %v2055 = vpop.f32.mrb[0].mxu0
        %v2056 = vadd.f32 %v1972, %v2055
        %v2057 = vpop.f32.mrb[0].mxu0
        %2058 = vmatprep.mubr.f32.mxu0 0.0
        %2059 = vmatmul.mubr.f32.gmra.mrb[0].mxu0 %v1962
        %v2060 = vpop.f32.mrb[0].mxu0
        %v2061 = vadd.f32 %v1977, %v2060
        %v2062 = vpop.f32.mrb[0].mxu0
        %2063 = vmatprep.mubr.f32.mxu0 0.0
        %2064 = vmatmul.mubr.f32.gmra.mrb[0].mxu0 %v1963
        %v2065 = vpop.f32.mrb[0].mxu0
        %v2066 = vadd.f32 %v1982, %v2065
        %v2067 = vpop.f32.mrb[0].mxu0
        %2068 = vdwg.mxu0
        %2069 = vadd.xlane.f32.xlu0 %v2051
        %v2070 = vpop.xlane.xlu0 %2069
        %2071 = vadd.xlane.f32.xlu0 %v2056
        %v2072 = vpop.xlane.xlu0 %2071
        %2073 = vadd.xlane.f32.xlu0 %v2061
        %v2074 = vpop.xlane.xlu0 %2073
        %2075 = vadd.xlane.f32.xlu0 %v2066
        %v2076 = vpop.xlane.xlu0 %2075
        %v2077 = vrcp.pop 128.0
        %v2078 = vmul.f32 %v2070, %v2077
        %v2079 = vmul.f32 %v2072, %v2077
        %v2080 = vmul.f32 %v2074, %v2077
        %v2081 = vmul.f32 %v2076, %v2077
        %v2082 = vadd.f32 %v2078, %v2079
        %v2083 = vadd.f32 %v2082, %v2080
        %v2084 = vadd.f32 %v2083, %v2081
        %v2085 = vrot.slane %v2084, 4
        %v2086 = vadd.f32 %v2084, %v2085
        %v2087 = vrot.slane %v2086, 2
        %v2088 = vadd.f32 %v2086, %v2087
        %v2089 = vrot.slane %v2088, 1
        %v2090 = vadd.f32 %v2088, %v2089
        %v2091 = vrcp.pop 32.0
        %v2092 = vmul.f32 %v2090, %v2091
        %v2093 = vsub.f32 %v2051, %v2092
        %v2094 = vsub.f32 %v2056, %v2092
        %v2095 = vsub.f32 %v2061, %v2092
        %v2096 = vsub.f32 %v2066, %v2092
        %v2097 = vmul.f32 %v2093, %v2093
        %v2098 = vmul.f32 %v2094, %v2094
        %v2099 = vmul.f32 %v2095, %v2095
        %v2100 = vmul.f32 %v2096, %v2096
        %2101 = vadd.xlane.f32.xlu0 %v2097
        %v2102 = vpop.xlane.xlu0 %2101
        %2103 = vadd.xlane.f32.xlu0 %v2098
        %v2104 = vpop.xlane.xlu0 %2103
        %2105 = vadd.xlane.f32.xlu0 %v2099
        %v2106 = vpop.xlane.xlu0 %2105
        %2107 = vadd.xlane.f32.xlu0 %v2100
        %v2108 = vpop.xlane.xlu0 %2107
        %v2109 = vmul.f32 %v2102, %v2077
        %v2110 = vmul.f32 %v2104, %v2077
        %v2111 = vmul.f32 %v2106, %v2077
        %v2112 = vmul.f32 %v2108, %v2077
        %v2113 = vadd.f32 %v2109, %v2110
        %v2114 = vadd.f32 %v2113, %v2111
        %v2115 = vadd.f32 %v2114, %v2112
        %v2116 = vrot.slane %v2115, 4
        %v2117 = vadd.f32 %v2115, %v2116
        %v2118 = vrot.slane %v2117, 2
        %v2119 = vadd.f32 %v2117, %v2118
        %v2120 = vrot.slane %v2119, 1
        %v2121 = vadd.f32 %v2119, %v2120
        %v2122 = vmul.f32 %v2121, %v2091
        %v2123 = vadd.f32 %v2122, 1e-05
        %v2124 = vrsqrt.pop %v2123
        %v2125 = vmul.f32 %v2093, %v2124
        %v2126 = vmul.f32 %v2094, %v2124
        %v2127 = vmul.f32 %v2095, %v2124
        %v2128 = vmul.f32 %v2096, %v2124
        %2129 = vset.pattern.permute.xlu0 1
        %2130 = vperm.xlu0 %2129, %v1956
        %v2131 = vpop.permute.xlu0 %2130
        %2133 = vset.pattern.permute.xlu0 1
        %2134 = vperm.xlu0 %2133, %v1957
        %v2135 = vpop.permute.xlu0 %2134
        %2137 = vset.pattern.permute.xlu0 1
        %2138 = vperm.xlu0 %2137, %v1958
        %v2139 = vpop.permute.xlu0 %2138
        %2141 = vset.pattern.permute.xlu0 1
        %2142 = vperm.xlu0 %2141, %v1959
        %v2143 = vpop.permute.xlu0 %2142
        %v2145 = vmul.f32 %v2125, %v2131
        %v2146 = vmul.f32 %v2126, %v2135
        %v2147 = vmul.f32 %v2127, %v2139
        %v2148 = vmul.f32 %v2128, %v2143
        %2149 = vset.pattern.permute.xlu0 2
        %2150 = vperm.xlu0 %2149, %v1956
        %v2151 = vpop.permute.xlu0 %2150
        %2153 = vset.pattern.permute.xlu0 2
        %2154 = vperm.xlu0 %2153, %v1957
        %v2155 = vpop.permute.xlu0 %2154
        %2157 = vset.pattern.permute.xlu0 2
        %2158 = vperm.xlu0 %2157, %v1958
        %v2159 = vpop.permute.xlu0 %2158
        %2161 = vset.pattern.permute.xlu0 2
        %2162 = vperm.xlu0 %2161, %v1959
        %v2163 = vpop.permute.xlu0 %2162
        %v2165 = vadd.f32 %v2145, %v2151
        %v2166 = vadd.f32 %v2146, %v2155
        %v2167 = vadd.f32 %v2147, %v2159
        %v2168 = vadd.f32 %v2148, %v2163
        %2169 = vst [vmem:[%s244] sm:$0xff] %v2165
        %2170 = vst [vmem:[%s244 + $0x8] sm:$0xff] %v2166
        %2171 = vst [vmem:[%s244 + $0x10] sm:$0xff] %v2167
        %2172 = vst [vmem:[%s244 + $0x18] sm:$0xff] %v2168
        %s2173 = sand.u32 %s159, 1
        %s2174 = scalar_lea.sflag [#allocation3], %s2173
        %s2175 = sand.u32 %s159, 1
        %s2176 = smul.addr %s2175, 32
        %s2177 = scalar_lea.vmem [#allocation2], %s2176
        // Predicated region
        $region45: #{tpu_custom_call.1} parent=43 // pred_check
          %p2178 = pneg %p169
        $region46: #{tpu_custom_call.1} parent=43 // pred_check_branch
          %2180 = sbr.rel (%p2178) target = $region48
        $region47: #{tpu_custom_call.1} parent=43 // pred_region
          %s2182 = ssub.s32 512, 512
          %2183 = vsyncadd %s2174, %s2182
          %s2184 = smul.addr %s20, 4
          %s2185 = smul.addr %s2184, 128
          %s2186 = scalar_lea.hbm %s6, %s2185
          %s2187 = sshll.u32 %s2177, 4
          %s2188 = int_to_ptr.vmem [resolvable:$true] %s2187
          %2193 = dma.vmem_to_hbm [thread:$0]  %s2188, 512, %s2186, %s2174, 128, 128, 8
        $region48: #{tpu_custom_call.1} parent=43 // pred_fallthru
          _
      $region44: #{tpu_custom_call.1} parent=5 // pred_fallthru
        _
      %p2194 = scmp.le.s32.totalorder 2, %s15
      // Predicated region
      $region49: #{tpu_custom_call.1} parent=5 // pred_check
        %p2195 = pneg %p2194
      $region50: #{tpu_custom_call.1} parent=5 // pred_check_branch
        %2197 = sbr.rel (%p2195) target = $region52
      $region51: #{tpu_custom_call.1} parent=5 // pred_region
        %s2198 = ssub.s32 %s15, 2
        // Predicated region
        $region53: #{tpu_custom_call.1} parent=51 // pred_check
          %p2199 = pneg %p175
        $region54: #{tpu_custom_call.1} parent=51 // pred_check_branch
          %2201 = sbr.rel (%p2199) target = $region56
        $region55: #{tpu_custom_call.1} parent=51 // pred_region
          %s2202 = sand.u32 %s160, 1
          %s2203 = scalar_lea.sflag [#allocation3], %s2202
          %s2204 = sand.u32 %s160, 1
          %s2205 = smul.addr %s2204, 32
          %s2206 = scalar_lea.vmem [#allocation2], %s2205
          %2207 = dma.done %s2203, 512
        $region56: #{tpu_custom_call.1} parent=51 // pred_fallthru
          _
      $region52: #{tpu_custom_call.1} parent=5 // pred_fallthru
        _
    $region6: #{tpu_custom_call.1} parent=1 // loop_footer
      %s19 = sadd.s32 1, %s15
    $region7: #{tpu_custom_call.1} parent=1 // loop_footer_branch
      %14 = sbr.rel target = $region3
    $region8: #{tpu_custom_call.1} parent=1 // loop_exit
      _
    %2208 = vsyncpa [#allocation3], 1
    %s2209 = scalar_lea.sflag [#allocation3], 1
    %2210 = vsyncpa %s2209, 1

</llo_original>
